<compile_context>
chip_gen: v7x
topology: tpu7x:2x2x1
jax: 0.10.0
libtpu: 0.0.40
codegen_flags: <defaults>
</compile_context>

<pallas_src>
import functools

import jax
import jax.numpy as jnp
from jax.experimental import pallas as pl
from jax.experimental.pallas import tpu as pltpu


def _round_up(x, m):
    return ((x + m - 1) // m) * m


def _pad2(x, shape):
    return jnp.pad(x, ((0, shape[0] - x.shape[0]), (0, shape[1] - x.shape[1])))


def _pad1(x, n):
    return jnp.pad(x, (0, n - x.shape[0]))


# ----------------------------------------------------------------------------
# Fused Pallas kernel: lin_in -> [MaxK -> SAGEConv(mean)] * L -> lin_out
# ----------------------------------------------------------------------------
def _sage_fused_kernel(
    a_ref,       # (Np, Np)            bf16 row-normalized adjacency
    x_ref,       # (Np, In_p)          bf16 input features (zero-padded)
    w_in_ref,    # (In_p, H_p)         bf16
    b_in_ref,    # (1, H_p)            f32
    wsn_ref,     # (L, 2*H_p, H_p)     bf16 [Wself; Wneigh] stacked per layer
    bl_ref,      # (L, 1, H_p)         f32  per-layer biases
    w_out_ref,   # (H_p, Out_p)        bf16
    b_out_ref,   # (1, Out_p)          f32
    o_ref,       # (Np, Out_p)         f32
    *,
    k,
    num_layers,
    hid_real,
):
    # ---- lin_in (bf16 operands, f32 accumulate) -----------------------------
    h = (
        jnp.dot(x_ref[...], w_in_ref[...], preferred_element_type=jnp.float32)
        + b_in_ref[...]
    )

    # Lane-validity mask for the real hidden width (hoisted out of the loop:
    # padded columns must never participate in the top-k threshold).
    col = jax.lax.broadcasted_iota(jnp.int32, h.shape, dimension=1)
    valid = col < hid_real

    a = a_ref[...]                       # bf16, loaded once
    minf = jnp.float32(-jnp.inf)

    for l in range(num_layers):          # static unroll over layers
        # ---- MaxK: keep the k largest entries per row, zero the rest -------
        # k-th largest via (k-1) max+mask passes + one final max.  k is a
        # small static int; ties are astronomically unlikely with floats.
        work = jnp.where(valid, h, minf)
        thr = jnp.max(work, axis=-1, keepdims=True)
        for _ in range(k - 1):           # static unroll
            work = jnp.where(work >= thr, minf, work)
            thr = jnp.max(work, axis=-1, keepdims=True)
        # Padded lanes of h are exactly 0 -> this where already yields 0 there.
        h = jnp.where(h >= thr, h, jnp.float32(0.0))

        # ---- SAGEConv('mean'): [h | A@h] @ [Wself; Wneigh] + b --------------
        hb = h.astype(jnp.bfloat16)
        h_neigh = jnp.dot(a, hb, preferred_element_type=jnp.float32)
        cat = jnp.concatenate([hb, h_neigh.astype(jnp.bfloat16)], axis=-1)
        h = (
            jnp.dot(cat, wsn_ref[l], preferred_element_type=jnp.float32)
            + bl_ref[l]
        )

    # ---- lin_out -------------------------------------------------------------
    o_ref[...] = (
        jnp.dot(h.astype(jnp.bfloat16), w_out_ref[...],
                preferred_element_type=jnp.float32)
        + b_out_ref[...]
    )


# ----------------------------------------------------------------------------
# One-time preparation: pad / stack / cast everything static (weights, graph)
# ----------------------------------------------------------------------------
def prepare_sage(a_mean, params):
    N = a_mean.shape[0]
    in_size, hid = params["w_in"].shape
    out = params["w_out"].shape[1]
    num_layers = len(params["layers"])

    n_pad = _round_up(N, 128)        # lane-dense A, full-depth A@h contraction
    in_pad = _round_up(in_size, 128)
    hid_pad = _round_up(hid, 128)
    out_pad = _round_up(out, 128)

    wsn = jnp.stack(
        [
            jnp.concatenate(
                [
                    _pad2(l["w_self"], (hid_pad, hid_pad)),
                    _pad2(l["w_neigh"], (hid_pad, hid_pad)),
                ],
                axis=0,
            )
            for l in params["layers"]
        ]
    ).astype(jnp.bfloat16)

    return {
        "N": N, "out": out, "hid": hid, "num_layers": num_layers,
        "n_pad": n_pad, "in_pad": in_pad, "hid_pad": hid_pad, "out_pad": out_pad,
        "a": _pad2(a_mean, (n_pad, n_pad)).astype(jnp.bfloat16),
        "w_in": _pad2(params["w_in"], (in_pad, hid_pad)).astype(jnp.bfloat16),
        "b_in": _pad1(params["b_in"], hid_pad).reshape(1, hid_pad),
        "wsn": wsn,
        "bl": jnp.stack(
            [_pad1(l["b"], hid_pad).reshape(1, hid_pad) for l in params["layers"]]
        ),
        "w_out": _pad2(params["w_out"], (hid_pad, out_pad)).astype(jnp.bfloat16),
        "b_out": _pad1(params["b_out"], out_pad).reshape(1, out_pad),
    }


def sage_forward_pallas(prep, x, k):
    """Fused forward pass.  Only x is padded/cast per call."""
    N = prep["N"]
    n_pad, in_pad = prep["n_pad"], prep["in_pad"]
    hid_pad, out_pad = prep["hid_pad"], prep["out_pad"]
    num_layers = prep["num_layers"]
    assert 0 < k <= prep["hid"], "MaxK k must satisfy 0 < k <= hid_size"

    xp = _pad2(x, (n_pad, in_pad)).astype(jnp.bfloat16)

    kernel = functools.partial(
        _sage_fused_kernel, k=k, num_layers=num_layers, hid_real=prep["hid"]
    )

    out_padded = pl.pallas_call(
        kernel,
        out_shape=jax.ShapeDtypeStruct((n_pad, out_pad), jnp.float32),
        grid=(1,),
        in_specs=[
            pl.BlockSpec((n_pad, n_pad), lambda i: (0, 0)),
            pl.BlockSpec((n_pad, in_pad), lambda i: (0, 0)),
            pl.BlockSpec((in_pad, hid_pad), lambda i: (0, 0)),
            pl.BlockSpec((1, hid_pad), lambda i: (0, 0)),
            pl.BlockSpec((num_layers, 2 * hid_pad, hid_pad), lambda i: (0, 0, 0)),
            pl.BlockSpec((num_layers, 1, hid_pad), lambda i: (0, 0, 0)),
            pl.BlockSpec((hid_pad, out_pad), lambda i: (0, 0)),
            pl.BlockSpec((1, out_pad), lambda i: (0, 0)),
        ],
        out_specs=pl.BlockSpec((n_pad, out_pad), lambda i: (0, 0)),
        compiler_params=pltpu.CompilerParams(
            dimension_semantics=("arbitrary",),
            vmem_limit_bytes=32 * 1024 * 1024,
        ),
    )(
        prep["a"], xp, prep["w_in"], prep["b_in"],
        prep["wsn"], prep["bl"], prep["w_out"], prep["b_out"],
    )

    return out_padded[:N, :prep["out"]]


# ----------------------------------------------------------------------------
# Parameter init (deterministic, Xavier-uniform like the PyTorch module)
# ----------------------------------------------------------------------------
def xavier_uniform(key, fan_in, fan_out):
    limit = jnp.sqrt(6.0 / (fan_in + fan_out))
    # stored as (in, out) so kernels do x @ W
    return jax.random.uniform(
        key, (fan_in, fan_out), jnp.float32, minval=-limit, maxval=limit
    )


def init_params(key, in_size, hid_size, num_layers, out_size):
    keys = jax.random.split(key, 2 + 2 * num_layers)
    params = {
        "w_in": xavier_uniform(keys[0], in_size, hid_size),
        "b_in": jnp.zeros((hid_size,), jnp.float32),
        "w_out": xavier_uniform(keys[1], hid_size, out_size),
        "b_out": jnp.zeros((out_size,), jnp.float32),
        "layers": [],
    }
    for i in range(num_layers):
        params["layers"].append(
            {
                "w_self": xavier_uniform(keys[2 + 2 * i], hid_size, hid_size),
                "w_neigh": xavier_uniform(keys[3 + 2 * i], hid_size, hid_size),
                "b": jnp.zeros((hid_size,), jnp.float32),
            }
        )
    return params


# ----------------------------------------------------------------------------
# Pure-JAX references
# ----------------------------------------------------------------------------
def sage_forward_ref_bf16(a_mean, x, params, k):
    """Mirrors the kernel's math (bf16 MXU operands, f32 accumulation)."""
    bf = lambda t: t.astype(jnp.bfloat16)
    a = bf(a_mean)
    h = jnp.dot(bf(x), bf(params["w_in"]),
                preferred_element_type=jnp.float32) + params["b_in"]
    for layer in params["layers"]:
        thr = jnp.sort(h, axis=-1)[:, -k][:, None]
        h = jnp.where(h >= thr, h, 0.0)
        hb = bf(h)
        h_neigh = jnp.dot(a, hb, preferred_element_type=jnp.float32)
        cat = jnp.concatenate([hb, bf(h_neigh)], axis=-1)
        w_cat = jnp.concatenate([layer["w_self"], layer["w_neigh"]], axis=0)
        h = jnp.dot(cat, bf(w_cat),
                    preferred_element_type=jnp.float32) + layer["b"]
    return jnp.dot(bf(h), bf(params["w_out"]),
                   preferred_element_type=jnp.float32) + params["b_out"]


def sage_forward_ref_f32(a_mean, x, params, k):
    x = x @ params["w_in"] + params["b_in"]
    for layer in params["layers"]:
        thr = jnp.sort(x, axis=-1)[:, -k][:, None]
        x = jnp.where(x >= thr, x, 0.0)
        h_neigh = a_mean @ x
        x = x @ layer["w_self"] + h_neigh @ layer["w_neigh"] + layer["b"]
    return x @ params["w_out"] + params["b_out"]


# ----------------------------------------------------------------------------
# Main
# ----------------------------------------------------------------------------
if __name__ == "__main__":
    N_NODES = 64
    IN_SIZE = 16
    HID_SIZE = 32
    OUT_SIZE = 8
    NUM_LAYERS = 2
    MAXK = 8

    root = jax.random.PRNGKey(0)
    k_feat, k_adj, k_param = jax.random.split(root, 3)

    # node features
    x = jax.random.normal(k_feat, (N_NODES, IN_SIZE), jnp.float32)

    # deterministic random graph -> row-normalized (mean) adjacency
    adj = (jax.random.uniform(k_adj, (N_NODES, N_NODES)) < 0.15).astype(jnp.float32)
    adj = adj * (1.0 - jnp.eye(N_NODES, dtype=jnp.float32))  # no self loops
    deg = jnp.maximum(adj.sum(axis=1, keepdims=True), 1.0)
    a_mean = adj / deg

    params = init_params(k_param, IN_SIZE, HID_SIZE, NUM_LAYERS, OUT_SIZE)

    # One-time padding / stacking / bf16 casting (hoisted out of the hot path).
    prep = prepare_sage(a_mean, params)

    out = sage_forward_pallas(prep, x, MAXK)
    out = jax.block_until_ready(out)
    assert out.shape == (N_NODES, OUT_SIZE)

    # Precision-faithful reference (same bf16-operand / f32-accumulate math).
    ref_bf16 = sage_forward_ref_bf16(a_mean, x, params, MAXK)
    assert jnp.allclose(out, ref_bf16, atol=1e-3, rtol=1e-3), (
        "Pallas output mismatch vs bf16-simulated reference"
    )

    # Informational: drift vs the pure-f32 reference due to bf16 MXU operands.
    ref_f32 = sage_forward_ref_f32(a_mean, x, params, MAXK)
    _ = float(jnp.max(jnp.abs(out - ref_f32)))  # not asserted (precision choice)

    print("KERNEL_OK")
</pallas_src>

<mosaic_0001>
module attributes {stable_mosaic.version = 11 : i64} {
  func.func @_sage_fused_kernel(%arg0: i32, %arg1: memref<128x128xbf16, #tpu.memory_space<vmem>>, %arg2: memref<128x128xbf16, #tpu.memory_space<vmem>>, %arg3: memref<128x128xbf16, #tpu.memory_space<vmem>>, %arg4: memref<1x128xf32, #tpu.memory_space<vmem>>, %arg5: memref<2x256x128xbf16, #tpu.memory_space<vmem>>, %arg6: memref<2x1x128xf32, #tpu.memory_space<vmem>>, %arg7: memref<128x128xbf16, #tpu.memory_space<vmem>>, %arg8: memref<1x128xf32, #tpu.memory_space<vmem>>, %arg9: memref<128x128xf32, #tpu.memory_space<vmem>>) attributes {dimension_semantics = [#tpu.dimension_semantics<arbitrary>], iteration_bounds = array<i64: 1>, scalar_prefetch = 0 : i64, scratch_operands = 0 : i64, tpu.core_type = #tpu.core_type<tc>, window_params = [{pipeline_mode = #tpu.pipeline_mode<synchronous>, transform_indices = @transform_0, window_bounds = array<i64: 128, 128>}, {pipeline_mode = #tpu.pipeline_mode<synchronous>, transform_indices = @transform_1, window_bounds = array<i64: 128, 128>}, {pipeline_mode = #tpu.pipeline_mode<synchronous>, transform_indices = @transform_2, window_bounds = array<i64: 128, 128>}, {pipeline_mode = #tpu.pipeline_mode<synchronous>, transform_indices = @transform_3, window_bounds = array<i64: 1, 128>}, {pipeline_mode = #tpu.pipeline_mode<synchronous>, transform_indices = @transform_4, window_bounds = array<i64: 2, 256, 128>}, {pipeline_mode = #tpu.pipeline_mode<synchronous>, transform_indices = @transform_5, window_bounds = array<i64: 2, 1, 128>}, {pipeline_mode = #tpu.pipeline_mode<synchronous>, transform_indices = @transform_6, window_bounds = array<i64: 128, 128>}, {pipeline_mode = #tpu.pipeline_mode<synchronous>, transform_indices = @transform_7, window_bounds = array<i64: 1, 128>}, {pipeline_mode = #tpu.pipeline_mode<synchronous>, transform_indices = @transform_8, window_bounds = array<i64: 128, 128>}]} {
    %c0 = arith.constant 0 : index
    %c0_0 = arith.constant 0 : index
    %0 = vector.load %arg2[%c0, %c0_0] : memref<128x128xbf16, #tpu.memory_space<vmem>>, vector<128x128xbf16>
    %c0_1 = arith.constant 0 : index
    %c0_2 = arith.constant 0 : index
    %1 = vector.load %arg3[%c0_1, %c0_2] : memref<128x128xbf16, #tpu.memory_space<vmem>>, vector<128x128xbf16>
    %cst = arith.constant dense<0.000000e+00> : vector<128x128xf32>
    %2 = tpu.matmul %0, %1, %cst {dimension_numbers = #tpu.dot_dimension_numbers<[1], [0], [0], [1], [0, 0, 1, 1], [], []>} : vector<128x128xbf16>, vector<128x128xbf16>, vector<128x128xf32> -> vector<128x128xf32>
    %c0_3 = arith.constant 0 : index
    %c0_4 = arith.constant 0 : index
    %3 = vector.load %arg4[%c0_3, %c0_4] : memref<1x128xf32, #tpu.memory_space<vmem>>, vector<1x128xf32>
    %4 = vector.broadcast %3 : vector<1x128xf32> to vector<128x128xf32>
    %5 = arith.addf %2, %4 : vector<128x128xf32>
    %6 = tpu.iota {dimensions = array<i32: 1>} : vector<128x128xi32>
    %c32_i32 = arith.constant 32 : i32
    %7 = vector.broadcast %c32_i32 : i32 to vector<128x128xi32>
    %8 = arith.cmpi slt, %6, %7 : vector<128x128xi32>
    %c0_5 = arith.constant 0 : index
    %c0_6 = arith.constant 0 : index
    %9 = vector.load %arg1[%c0_5, %c0_6] : memref<128x128xbf16, #tpu.memory_space<vmem>>, vector<128x128xbf16>
    %cst_7 = arith.constant 0xFF800000 : f32
    %10 = vector.broadcast %cst_7 : f32 to vector<128x128xf32>
    %11 = arith.select %8, %5, %10 : vector<128x128xi1>, vector<128x128xf32>
    %cst_8 = arith.constant dense<0xFF800000> : vector<128xf32>
    %12 = vector.multi_reduction <maximumf>, %11, %cst_8 [1] : vector<128x128xf32> to vector<128xf32>
    %13 = vector.shape_cast %12 : vector<128xf32> to vector<128x1xf32>
    %14 = vector.broadcast %13 : vector<128x1xf32> to vector<128x128xf32>
    %15 = arith.cmpf oge, %11, %14 : vector<128x128xf32>
    %cst_9 = arith.constant 0xFF800000 : f32
    %16 = vector.broadcast %cst_9 : f32 to vector<128x128xf32>
    %17 = arith.select %15, %16, %11 : vector<128x128xi1>, vector<128x128xf32>
    %cst_10 = arith.constant dense<0xFF800000> : vector<128xf32>
    %18 = vector.multi_reduction <maximumf>, %17, %cst_10 [1] : vector<128x128xf32> to vector<128xf32>
    %19 = vector.shape_cast %18 : vector<128xf32> to vector<128x1xf32>
    %20 = vector.broadcast %19 : vector<128x1xf32> to vector<128x128xf32>
    %21 = arith.cmpf oge, %17, %20 : vector<128x128xf32>
    %cst_11 = arith.constant 0xFF800000 : f32
    %22 = vector.broadcast %cst_11 : f32 to vector<128x128xf32>
    %23 = arith.select %21, %22, %17 : vector<128x128xi1>, vector<128x128xf32>
    %cst_12 = arith.constant dense<0xFF800000> : vector<128xf32>
    %24 = vector.multi_reduction <maximumf>, %23, %cst_12 [1] : vector<128x128xf32> to vector<128xf32>
    %25 = vector.shape_cast %24 : vector<128xf32> to vector<128x1xf32>
    %26 = vector.broadcast %25 : vector<128x1xf32> to vector<128x128xf32>
    %27 = arith.cmpf oge, %23, %26 : vector<128x128xf32>
    %cst_13 = arith.constant 0xFF800000 : f32
    %28 = vector.broadcast %cst_13 : f32 to vector<128x128xf32>
    %29 = arith.select %27, %28, %23 : vector<128x128xi1>, vector<128x128xf32>
    %cst_14 = arith.constant dense<0xFF800000> : vector<128xf32>
    %30 = vector.multi_reduction <maximumf>, %29, %cst_14 [1] : vector<128x128xf32> to vector<128xf32>
    %31 = vector.shape_cast %30 : vector<128xf32> to vector<128x1xf32>
    %32 = vector.broadcast %31 : vector<128x1xf32> to vector<128x128xf32>
    %33 = arith.cmpf oge, %29, %32 : vector<128x128xf32>
    %cst_15 = arith.constant 0xFF800000 : f32
    %34 = vector.broadcast %cst_15 : f32 to vector<128x128xf32>
    %35 = arith.select %33, %34, %29 : vector<128x128xi1>, vector<128x128xf32>
    %cst_16 = arith.constant dense<0xFF800000> : vector<128xf32>
    %36 = vector.multi_reduction <maximumf>, %35, %cst_16 [1] : vector<128x128xf32> to vector<128xf32>
    %37 = vector.shape_cast %36 : vector<128xf32> to vector<128x1xf32>
    %38 = vector.broadcast %37 : vector<128x1xf32> to vector<128x128xf32>
    %39 = arith.cmpf oge, %35, %38 : vector<128x128xf32>
    %cst_17 = arith.constant 0xFF800000 : f32
    %40 = vector.broadcast %cst_17 : f32 to vector<128x128xf32>
    %41 = arith.select %39, %40, %35 : vector<128x128xi1>, vector<128x128xf32>
    %cst_18 = arith.constant dense<0xFF800000> : vector<128xf32>
    %42 = vector.multi_reduction <maximumf>, %41, %cst_18 [1] : vector<128x128xf32> to vector<128xf32>
    %43 = vector.shape_cast %42 : vector<128xf32> to vector<128x1xf32>
    %44 = vector.broadcast %43 : vector<128x1xf32> to vector<128x128xf32>
    %45 = arith.cmpf oge, %41, %44 : vector<128x128xf32>
    %cst_19 = arith.constant 0xFF800000 : f32
    %46 = vector.broadcast %cst_19 : f32 to vector<128x128xf32>
    %47 = arith.select %45, %46, %41 : vector<128x128xi1>, vector<128x128xf32>
    %cst_20 = arith.constant dense<0xFF800000> : vector<128xf32>
    %48 = vector.multi_reduction <maximumf>, %47, %cst_20 [1] : vector<128x128xf32> to vector<128xf32>
    %49 = vector.shape_cast %48 : vector<128xf32> to vector<128x1xf32>
    %50 = vector.broadcast %49 : vector<128x1xf32> to vector<128x128xf32>
    %51 = arith.cmpf oge, %47, %50 : vector<128x128xf32>
    %cst_21 = arith.constant 0xFF800000 : f32
    %52 = vector.broadcast %cst_21 : f32 to vector<128x128xf32>
    %53 = arith.select %51, %52, %47 : vector<128x128xi1>, vector<128x128xf32>
    %cst_22 = arith.constant dense<0xFF800000> : vector<128xf32>
    %54 = vector.multi_reduction <maximumf>, %53, %cst_22 [1] : vector<128x128xf32> to vector<128xf32>
    %55 = vector.shape_cast %54 : vector<128xf32> to vector<128x1xf32>
    %56 = vector.broadcast %55 : vector<128x1xf32> to vector<128x128xf32>
    %57 = arith.cmpf oge, %5, %56 : vector<128x128xf32>
    %cst_23 = arith.constant 0.000000e+00 : f32
    %58 = vector.broadcast %cst_23 : f32 to vector<128x128xf32>
    %59 = arith.select %57, %5, %58 : vector<128x128xi1>, vector<128x128xf32>
    %60 = arith.truncf %59 : vector<128x128xf32> to vector<128x128xbf16>
    %cst_24 = arith.constant dense<0.000000e+00> : vector<128x128xf32>
    %61 = tpu.matmul %9, %60, %cst_24 {dimension_numbers = #tpu.dot_dimension_numbers<[1], [0], [0], [1], [0, 0, 1, 1], [], []>} : vector<128x128xbf16>, vector<128x128xbf16>, vector<128x128xf32> -> vector<128x128xf32>
    %62 = arith.truncf %61 : vector<128x128xf32> to vector<128x128xbf16>
    %63 = tpu.concatenate %60, %62 in 1 : vector<128x128xbf16>, vector<128x128xbf16> -> vector<128x256xbf16>
    %c0_25 = arith.constant 0 : index
    %c0_26 = arith.constant 0 : index
    %c0_27 = arith.constant 0 : index
    %64 = vector.load %arg5[%c0_25, %c0_26, %c0_27] : memref<2x256x128xbf16, #tpu.memory_space<vmem>>, vector<1x256x128xbf16>
    %65 = vector.shape_cast %64 : vector<1x256x128xbf16> to vector<256x128xbf16>
    %cst_28 = arith.constant dense<0.000000e+00> : vector<128x128xf32>
    %66 = tpu.matmul %63, %65, %cst_28 {dimension_numbers = #tpu.dot_dimension_numbers<[1], [0], [0], [1], [0, 0, 1, 1], [], []>} : vector<128x256xbf16>, vector<256x128xbf16>, vector<128x128xf32> -> vector<128x128xf32>
    %c0_29 = arith.constant 0 : index
    %c0_30 = arith.constant 0 : index
    %c0_31 = arith.constant 0 : index
    %67 = vector.load %arg6[%c0_29, %c0_30, %c0_31] : memref<2x1x128xf32, #tpu.memory_space<vmem>>, vector<1x1x128xf32>
    %68 = vector.shape_cast %67 : vector<1x1x128xf32> to vector<1x128xf32>
    %69 = vector.broadcast %68 : vector<1x128xf32> to vector<128x128xf32>
    %70 = arith.addf %66, %69 : vector<128x128xf32>
    %cst_32 = arith.constant 0xFF800000 : f32
    %71 = vector.broadcast %cst_32 : f32 to vector<128x128xf32>
    %72 = arith.select %8, %70, %71 : vector<128x128xi1>, vector<128x128xf32>
    %cst_33 = arith.constant dense<0xFF800000> : vector<128xf32>
    %73 = vector.multi_reduction <maximumf>, %72, %cst_33 [1] : vector<128x128xf32> to vector<128xf32>
    %74 = vector.shape_cast %73 : vector<128xf32> to vector<128x1xf32>
    %75 = vector.broadcast %74 : vector<128x1xf32> to vector<128x128xf32>
    %76 = arith.cmpf oge, %72, %75 : vector<128x128xf32>
    %cst_34 = arith.constant 0xFF800000 : f32
    %77 = vector.broadcast %cst_34 : f32 to vector<128x128xf32>
    %78 = arith.select %76, %77, %72 : vector<128x128xi1>, vector<128x128xf32>
    %cst_35 = arith.constant dense<0xFF800000> : vector<128xf32>
    %79 = vector.multi_reduction <maximumf>, %78, %cst_35 [1] : vector<128x128xf32> to vector<128xf32>
    %80 = vector.shape_cast %79 : vector<128xf32> to vector<128x1xf32>
    %81 = vector.broadcast %80 : vector<128x1xf32> to vector<128x128xf32>
    %82 = arith.cmpf oge, %78, %81 : vector<128x128xf32>
    %cst_36 = arith.constant 0xFF800000 : f32
    %83 = vector.broadcast %cst_36 : f32 to vector<128x128xf32>
    %84 = arith.select %82, %83, %78 : vector<128x128xi1>, vector<128x128xf32>
    %cst_37 = arith.constant dense<0xFF800000> : vector<128xf32>
    %85 = vector.multi_reduction <maximumf>, %84, %cst_37 [1] : vector<128x128xf32> to vector<128xf32>
    %86 = vector.shape_cast %85 : vector<128xf32> to vector<128x1xf32>
    %87 = vector.broadcast %86 : vector<128x1xf32> to vector<128x128xf32>
    %88 = arith.cmpf oge, %84, %87 : vector<128x128xf32>
    %cst_38 = arith.constant 0xFF800000 : f32
    %89 = vector.broadcast %cst_38 : f32 to vector<128x128xf32>
    %90 = arith.select %88, %89, %84 : vector<128x128xi1>, vector<128x128xf32>
    %cst_39 = arith.constant dense<0xFF800000> : vector<128xf32>
    %91 = vector.multi_reduction <maximumf>, %90, %cst_39 [1] : vector<128x128xf32> to vector<128xf32>
    %92 = vector.shape_cast %91 : vector<128xf32> to vector<128x1xf32>
    %93 = vector.broadcast %92 : vector<128x1xf32> to vector<128x128xf32>
    %94 = arith.cmpf oge, %90, %93 : vector<128x128xf32>
    %cst_40 = arith.constant 0xFF800000 : f32
    %95 = vector.broadcast %cst_40 : f32 to vector<128x128xf32>
    %96 = arith.select %94, %95, %90 : vector<128x128xi1>, vector<128x128xf32>
    %cst_41 = arith.constant dense<0xFF800000> : vector<128xf32>
    %97 = vector.multi_reduction <maximumf>, %96, %cst_41 [1] : vector<128x128xf32> to vector<128xf32>
    %98 = vector.shape_cast %97 : vector<128xf32> to vector<128x1xf32>
    %99 = vector.broadcast %98 : vector<128x1xf32> to vector<128x128xf32>
    %100 = arith.cmpf oge, %96, %99 : vector<128x128xf32>
    %cst_42 = arith.constant 0xFF800000 : f32
    %101 = vector.broadcast %cst_42 : f32 to vector<128x128xf32>
    %102 = arith.select %100, %101, %96 : vector<128x128xi1>, vector<128x128xf32>
    %cst_43 = arith.constant dense<0xFF800000> : vector<128xf32>
    %103 = vector.multi_reduction <maximumf>, %102, %cst_43 [1] : vector<128x128xf32> to vector<128xf32>
    %104 = vector.shape_cast %103 : vector<128xf32> to vector<128x1xf32>
    %105 = vector.broadcast %104 : vector<128x1xf32> to vector<128x128xf32>
    %106 = arith.cmpf oge, %102, %105 : vector<128x128xf32>
    %cst_44 = arith.constant 0xFF800000 : f32
    %107 = vector.broadcast %cst_44 : f32 to vector<128x128xf32>
    %108 = arith.select %106, %107, %102 : vector<128x128xi1>, vector<128x128xf32>
    %cst_45 = arith.constant dense<0xFF800000> : vector<128xf32>
    %109 = vector.multi_reduction <maximumf>, %108, %cst_45 [1] : vector<128x128xf32> to vector<128xf32>
    %110 = vector.shape_cast %109 : vector<128xf32> to vector<128x1xf32>
    %111 = vector.broadcast %110 : vector<128x1xf32> to vector<128x128xf32>
    %112 = arith.cmpf oge, %108, %111 : vector<128x128xf32>
    %cst_46 = arith.constant 0xFF800000 : f32
    %113 = vector.broadcast %cst_46 : f32 to vector<128x128xf32>
    %114 = arith.select %112, %113, %108 : vector<128x128xi1>, vector<128x128xf32>
    %cst_47 = arith.constant dense<0xFF800000> : vector<128xf32>
    %115 = vector.multi_reduction <maximumf>, %114, %cst_47 [1] : vector<128x128xf32> to vector<128xf32>
    %116 = vector.shape_cast %115 : vector<128xf32> to vector<128x1xf32>
    %117 = vector.broadcast %116 : vector<128x1xf32> to vector<128x128xf32>
    %118 = arith.cmpf oge, %70, %117 : vector<128x128xf32>
    %cst_48 = arith.constant 0.000000e+00 : f32
    %119 = vector.broadcast %cst_48 : f32 to vector<128x128xf32>
    %120 = arith.select %118, %70, %119 : vector<128x128xi1>, vector<128x128xf32>
    %121 = arith.truncf %120 : vector<128x128xf32> to vector<128x128xbf16>
    %cst_49 = arith.constant dense<0.000000e+00> : vector<128x128xf32>
    %122 = tpu.matmul %9, %121, %cst_49 {dimension_numbers = #tpu.dot_dimension_numbers<[1], [0], [0], [1], [0, 0, 1, 1], [], []>} : vector<128x128xbf16>, vector<128x128xbf16>, vector<128x128xf32> -> vector<128x128xf32>
    %123 = arith.truncf %122 : vector<128x128xf32> to vector<128x128xbf16>
    %124 = tpu.concatenate %121, %123 in 1 : vector<128x128xbf16>, vector<128x128xbf16> -> vector<128x256xbf16>
    %c1 = arith.constant 1 : index
    %c0_50 = arith.constant 0 : index
    %c0_51 = arith.constant 0 : index
    %125 = vector.load %arg5[%c1, %c0_50, %c0_51] : memref<2x256x128xbf16, #tpu.memory_space<vmem>>, vector<1x256x128xbf16>
    %126 = vector.shape_cast %125 : vector<1x256x128xbf16> to vector<256x128xbf16>
    %cst_52 = arith.constant dense<0.000000e+00> : vector<128x128xf32>
    %127 = tpu.matmul %124, %126, %cst_52 {dimension_numbers = #tpu.dot_dimension_numbers<[1], [0], [0], [1], [0, 0, 1, 1], [], []>} : vector<128x256xbf16>, vector<256x128xbf16>, vector<128x128xf32> -> vector<128x128xf32>
    %c1_53 = arith.constant 1 : index
    %c0_54 = arith.constant 0 : index
    %c0_55 = arith.constant 0 : index
    %128 = vector.load %arg6[%c1_53, %c0_54, %c0_55] : memref<2x1x128xf32, #tpu.memory_space<vmem>>, vector<1x1x128xf32>
    %129 = vector.shape_cast %128 : vector<1x1x128xf32> to vector<1x128xf32>
    %130 = vector.broadcast %129 : vector<1x128xf32> to vector<128x128xf32>
    %131 = arith.addf %127, %130 : vector<128x128xf32>
    %132 = arith.truncf %131 : vector<128x128xf32> to vector<128x128xbf16>
    %c0_56 = arith.constant 0 : index
    %c0_57 = arith.constant 0 : index
    %133 = vector.load %arg7[%c0_56, %c0_57] : memref<128x128xbf16, #tpu.memory_space<vmem>>, vector<128x128xbf16>
    %cst_58 = arith.constant dense<0.000000e+00> : vector<128x128xf32>
    %134 = tpu.matmul %132, %133, %cst_58 {dimension_numbers = #tpu.dot_dimension_numbers<[1], [0], [0], [1], [0, 0, 1, 1], [], []>} : vector<128x128xbf16>, vector<128x128xbf16>, vector<128x128xf32> -> vector<128x128xf32>
    %c0_59 = arith.constant 0 : index
    %c0_60 = arith.constant 0 : index
    %135 = vector.load %arg8[%c0_59, %c0_60] : memref<1x128xf32, #tpu.memory_space<vmem>>, vector<1x128xf32>
    %136 = vector.broadcast %135 : vector<1x128xf32> to vector<128x128xf32>
    %137 = arith.addf %134, %136 : vector<128x128xf32>
    %c0_61 = arith.constant 0 : index
    %c0_62 = arith.constant 0 : index
    %138 = vector.load %arg9[%c0_61, %c0_62] : memref<128x128xf32, #tpu.memory_space<vmem>>, vector<128x128xf32>
    tpu.vector_store %arg9[%c0_61, %c0_62], %137 {strides = array<i32>} : memref<128x128xf32, #tpu.memory_space<vmem>>, vector<128x128xf32>,
    return
  }
  func.func @transform_0(%arg0: i32) -> (i32, i32) {
    %c0_i32 = arith.constant 0 : i32
    %c0_i32_0 = arith.constant 0 : i32
    %c0_i32_1 = arith.constant 0 : i32
    return %c0_i32, %c0_i32_0 : i32, i32
  }
  func.func @transform_1(%arg0: i32) -> (i32, i32) {
    %c0_i32 = arith.constant 0 : i32
    %c0_i32_0 = arith.constant 0 : i32
    %c0_i32_1 = arith.constant 0 : i32
    return %c0_i32, %c0_i32_0 : i32, i32
  }
  func.func @transform_2(%arg0: i32) -> (i32, i32) {
    %c0_i32 = arith.constant 0 : i32
    %c0_i32_0 = arith.constant 0 : i32
    %c0_i32_1 = arith.constant 0 : i32
    return %c0_i32, %c0_i32_0 : i32, i32
  }
  func.func @transform_3(%arg0: i32) -> (i32, i32) {
    %c0_i32 = arith.constant 0 : i32
    %c0_i32_0 = arith.constant 0 : i32
    %c0_i32_1 = arith.constant 0 : i32
    return %c0_i32, %c0_i32_0 : i32, i32
  }
  func.func @transform_4(%arg0: i32) -> (i32, i32, i32) {
    %c0_i32 = arith.constant 0 : i32
    %c0_i32_0 = arith.constant 0 : i32
    %c0_i32_1 = arith.constant 0 : i32
    %c0_i32_2 = arith.constant 0 : i32
    return %c0_i32, %c0_i32_0, %c0_i32_1 : i32, i32, i32
  }
  func.func @transform_5(%arg0: i32) -> (i32, i32, i32) {
    %c0_i32 = arith.constant 0 : i32
    %c0_i32_0 = arith.constant 0 : i32
    %c0_i32_1 = arith.constant 0 : i32
    %c0_i32_2 = arith.constant 0 : i32
    return %c0_i32, %c0_i32_0, %c0_i32_1 : i32, i32, i32
  }
  func.func @transform_6(%arg0: i32) -> (i32, i32) {
    %c0_i32 = arith.constant 0 : i32
    %c0_i32_0 = arith.constant 0 : i32
    %c0_i32_1 = arith.constant 0 : i32
    return %c0_i32, %c0_i32_0 : i32, i32
  }
  func.func @transform_7(%arg0: i32) -> (i32, i32) {
    %c0_i32 = arith.constant 0 : i32
    %c0_i32_0 = arith.constant 0 : i32
    %c0_i32_1 = arith.constant 0 : i32
    return %c0_i32, %c0_i32_0 : i32, i32
  }
  func.func @transform_8(%arg0: i32) -> (i32, i32) {
    %c0_i32 = arith.constant 0 : i32
    %c0_i32_0 = arith.constant 0 : i32
    %c0_i32_1 = arith.constant 0 : i32
    return %c0_i32, %c0_i32_0 : i32, i32
  }
}

</mosaic_0001>

<llo_original>
// kernel: tpu_custom_call.1
$region0: #{tpu_custom_call.1}
  #allocation0 [shape = 'u32[]', space=smem, size = 0x4, offset = 0x4, fixed_abs, tag = 'smem constant byte address 0x4 - core index']
  #allocation1 [shape = 'u32[144,128]{1,0:T(1,128)}', space=vmem, size = 0x12000, scoped, tag = 'internal scratch']
  %s0 = inlined_call_operand.hbm [shape: bf16[128,128], index: 0, kind: input, shape index: {}]
  %s1 = inlined_call_operand.hbm [shape: bf16[128,128], index: 1, kind: input, shape index: {}]
  %s2 = inlined_call_operand.hbm [shape: bf16[128,128], index: 2, kind: input, shape index: {}]
  %s3 = inlined_call_operand.vmem [shape: f32[1,128], index: 3, kind: input, shape index: {}]
  %s4 = inlined_call_operand.hbm [shape: bf16[2,256,128], index: 4, kind: input, shape index: {}]
  %s5 = inlined_call_operand.vmem [shape: f32[2,1,128], index: 5, kind: input, shape index: {}]
  %s6 = inlined_call_operand.hbm [shape: bf16[128,128], index: 6, kind: input, shape index: {}]
  %s7 = inlined_call_operand.vmem [shape: f32[1,128], index: 7, kind: input, shape index: {}]
  %s8 = inlined_call_operand.hbm [shape: f32[128,128], index: 8, kind: output, shape index: {}]
  %s9 = sld [smem:[#allocation0]]
  $region62: #{tpu_custom_call.1} parent=0
    _
  %s11 = ssub.s32 1, %s9
  %s12 = scalar_select 0, %s11, %s9
  $region1: #{tpu_custom_call.1} parent=0
    #allocation2 [shape = 'u8[32768]{0}', space=vmem, size = 0x8000, scoped, tag = 'input window, operand 0, single buffered']
    #allocation3 [shape = 's32[1]{0}', space=sflag, size = 0x4, scoped, tag = 'scoped memory for tpu_custom_call.1']
    #allocation4 [shape = 's32[1]{0}', space=sflag, size = 0x4, scoped, tag = 'scoped memory for tpu_custom_call.1']
    #allocation5 [shape = 'u8[32768]{0}', space=vmem, size = 0x8000, scoped, tag = 'input window, operand 1, single buffered']
    #allocation6 [shape = 's32[1]{0}', space=sflag, size = 0x4, scoped, tag = 'scoped memory for tpu_custom_call.1']
    #allocation7 [shape = 'u8[32768]{0}', space=vmem, size = 0x8000, scoped, tag = 'input window, operand 2, single buffered']
    #allocation8 [shape = 'u8[131072]{0}', space=vmem, size = 0x20000, scoped, tag = 'input window, operand 4, single buffered']
    #allocation9 [shape = 's32[1]{0}', space=sflag, size = 0x4, scoped, tag = 'scoped memory for tpu_custom_call.1']
    #allocation10 [shape = 'u8[32768]{0}', space=vmem, size = 0x8000, scoped, tag = 'input window, operand 6, single buffered']
    #allocation11 [shape = 'u8[65536]{0}', space=vmem, size = 0x10000, scoped, tag = 'output window, operand 0, single buffered']
    %13 = vsyncpa [#allocation3], 0
    %14 = vsyncpa [#allocation6], 0
    %15 = vsyncpa [#allocation9], 0
    %16 = vsyncpa [#allocation4], 0
    // Predicated region
    $region2: #{tpu_custom_call.1} parent=1 // pred_check
      _
    $region3: #{tpu_custom_call.1} parent=1 // pred_check_branch
      %18 = sbr.rel (0) target = $region5
    $region4: #{tpu_custom_call.1} parent=1 // pred_region
      %s20 = ssub.s32 1024, 1024
      %21 = vsyncadd [#allocation3], %s20
      %s22 = sshll.u32 [#allocation2], 4
      %s23 = int_to_ptr.vmem [resolvable:$true] %s22
      %28 = dma.hbm_to_vmem [thread:$0]  %s0, 1024, %s23, [#allocation3], 64, 64, 4
    $region5: #{tpu_custom_call.1} parent=1 // pred_fallthru
      _
    // Predicated region
    $region6: #{tpu_custom_call.1} parent=1 // pred_check
      _
    $region7: #{tpu_custom_call.1} parent=1 // pred_check_branch
      %30 = sbr.rel (0) target = $region9
    $region8: #{tpu_custom_call.1} parent=1 // pred_region
      %s32 = ssub.s32 1024, 1024
      %33 = vsyncadd [#allocation6], %s32
      %s34 = sshll.u32 [#allocation5], 4
      %s35 = int_to_ptr.vmem [resolvable:$true] %s34
      %40 = dma.hbm_to_vmem [thread:$0]  %s1, 1024, %s35, [#allocation6], 64, 64, 4
    $region9: #{tpu_custom_call.1} parent=1 // pred_fallthru
      _
    // Predicated region
    $region10: #{tpu_custom_call.1} parent=1 // pred_check
      _
    $region11: #{tpu_custom_call.1} parent=1 // pred_check_branch
      %42 = sbr.rel (0) target = $region13
    $region12: #{tpu_custom_call.1} parent=1 // pred_region
      %s44 = ssub.s32 1024, 1024
      %45 = vsyncadd [#allocation6], %s44
      %s46 = sshll.u32 [#allocation7], 4
      %s47 = int_to_ptr.vmem [resolvable:$true] %s46
      %52 = dma.hbm_to_vmem [thread:$0]  %s2, 1024, %s47, [#allocation6], 64, 64, 4
    $region13: #{tpu_custom_call.1} parent=1 // pred_fallthru
      _
    // Predicated region
    $region14: #{tpu_custom_call.1} parent=1 // pred_check
      _
    $region15: #{tpu_custom_call.1} parent=1 // pred_check_branch
      %54 = sbr.rel (0) target = $region17
    $region16: #{tpu_custom_call.1} parent=1 // pred_region
      _
    $region17: #{tpu_custom_call.1} parent=1 // pred_fallthru
      _
    // Predicated region
    $region18: #{tpu_custom_call.1} parent=1 // pred_check
      _
    $region19: #{tpu_custom_call.1} parent=1 // pred_check_branch
      %56 = sbr.rel (0) target = $region21
    $region20: #{tpu_custom_call.1} parent=1 // pred_region
      %s58 = ssub.s32 4096, 4096
      %59 = vsyncadd [#allocation9], %s58
      %s60 = sshll.u32 [#allocation8], 4
      %s61 = int_to_ptr.vmem [resolvable:$true] %s60
      %66 = dma.hbm_to_vmem [thread:$0]  %s4, 4096, %s61, [#allocation9], 64, 64, 4
    $region21: #{tpu_custom_call.1} parent=1 // pred_fallthru
      _
    // Predicated region
    $region22: #{tpu_custom_call.1} parent=1 // pred_check
      _
    $region23: #{tpu_custom_call.1} parent=1 // pred_check_branch
      %68 = sbr.rel (0) target = $region25
    $region24: #{tpu_custom_call.1} parent=1 // pred_region
      _
    $region25: #{tpu_custom_call.1} parent=1 // pred_fallthru
      _
    // Predicated region
    $region26: #{tpu_custom_call.1} parent=1 // pred_check
      _
    $region27: #{tpu_custom_call.1} parent=1 // pred_check_branch
      %70 = sbr.rel (0) target = $region29
    $region28: #{tpu_custom_call.1} parent=1 // pred_region
      %s72 = ssub.s32 1024, 1024
      %73 = vsyncadd [#allocation9], %s72
      %s74 = sshll.u32 [#allocation10], 4
      %s75 = int_to_ptr.vmem [resolvable:$true] %s74
      %80 = dma.hbm_to_vmem [thread:$0]  %s6, 1024, %s75, [#allocation9], 64, 64, 4
    $region29: #{tpu_custom_call.1} parent=1 // pred_fallthru
      _
    // Predicated region
    $region30: #{tpu_custom_call.1} parent=1 // pred_check
      _
    $region31: #{tpu_custom_call.1} parent=1 // pred_check_branch
      %82 = sbr.rel (0) target = $region33
    $region32: #{tpu_custom_call.1} parent=1 // pred_region
      _
    $region33: #{tpu_custom_call.1} parent=1 // pred_fallthru
      _
    // Predicated region
    $region34: #{tpu_custom_call.1} parent=1 // pred_check
      _
    $region35: #{tpu_custom_call.1} parent=1 // pred_check_branch
      %84 = sbr.rel (0) target = $region37
    $region36: #{tpu_custom_call.1} parent=1 // pred_region
      %85 = dma.done [#allocation3], 1024
    $region37: #{tpu_custom_call.1} parent=1 // pred_fallthru
      _
    // Predicated region
    $region38: #{tpu_custom_call.1} parent=1 // pred_check
      _
    $region39: #{tpu_custom_call.1} parent=1 // pred_check_branch
      %87 = sbr.rel (0) target = $region41
    $region40: #{tpu_custom_call.1} parent=1 // pred_region
      %88 = dma.done [#allocation6], 1024
    $region41: #{tpu_custom_call.1} parent=1 // pred_fallthru
      _
    // Predicated region
    $region42: #{tpu_custom_call.1} parent=1 // pred_check
      _
    $region43: #{tpu_custom_call.1} parent=1 // pred_check_branch
      %90 = sbr.rel (0) target = $region45
    $region44: #{tpu_custom_call.1} parent=1 // pred_region
      %91 = dma.done [#allocation6], 1024
    $region45: #{tpu_custom_call.1} parent=1 // pred_fallthru
      _
    // Predicated region
    $region46: #{tpu_custom_call.1} parent=1 // pred_check
      _
    $region47: #{tpu_custom_call.1} parent=1 // pred_check_branch
      %93 = sbr.rel (0) target = $region49
    $region48: #{tpu_custom_call.1} parent=1 // pred_region
      %94 = dma.done [#allocation9], 4096
    $region49: #{tpu_custom_call.1} parent=1 // pred_fallthru
      _
    // Predicated region
    $region50: #{tpu_custom_call.1} parent=1 // pred_check
      _
    $region51: #{tpu_custom_call.1} parent=1 // pred_check_branch
      %96 = sbr.rel (0) target = $region53
    $region52: #{tpu_custom_call.1} parent=1 // pred_region
      %97 = dma.done [#allocation9], 1024
    $region53: #{tpu_custom_call.1} parent=1 // pred_fallthru
      _
    %v99 = vld [vmem:[#allocation5] sm:$0xf]
    %v100 = vld [vmem:[#allocation5 + $0x4] sm:$0xf]
    %v101 = vld [vmem:[#allocation5 + $0x8] sm:$0xf]
    %v102 = vld [vmem:[#allocation5 + $0xc] sm:$0xf]
    %v103 = vld [vmem:[#allocation5 + $0x10] sm:$0xf]
    %v104 = vld [vmem:[#allocation5 + $0x14] sm:$0xf]
    %v105 = vld [vmem:[#allocation5 + $0x18] sm:$0xf]
    %v106 = vld [vmem:[#allocation5 + $0x1c] sm:$0xf]
    %v107 = vld [vmem:[#allocation5 + $0x20] sm:$0xf]
    %v108 = vld [vmem:[#allocation5 + $0x24] sm:$0xf]
    %v109 = vld [vmem:[#allocation5 + $0x28] sm:$0xf]
    %v110 = vld [vmem:[#allocation5 + $0x2c] sm:$0xf]
    %v111 = vld [vmem:[#allocation5 + $0x30] sm:$0xf]
    %v112 = vld [vmem:[#allocation5 + $0x34] sm:$0xf]
    %v113 = vld [vmem:[#allocation5 + $0x38] sm:$0xf]
    %v114 = vld [vmem:[#allocation5 + $0x3c] sm:$0xf]
    %v115 = vld [vmem:[#allocation7] sm:$0xf]
    %v116 = vld [vmem:[#allocation7 + $0x4] sm:$0xf]
    %v117 = vld [vmem:[#allocation7 + $0x8] sm:$0xf]
    %v118 = vld [vmem:[#allocation7 + $0xc] sm:$0xf]
    %v119 = vld [vmem:[#allocation7 + $0x10] sm:$0xf]
    %v120 = vld [vmem:[#allocation7 + $0x14] sm:$0xf]
    %v121 = vld [vmem:[#allocation7 + $0x18] sm:$0xf]
    %v122 = vld [vmem:[#allocation7 + $0x1c] sm:$0xf]
    %v123 = vld [vmem:[#allocation7 + $0x20] sm:$0xf]
    %v124 = vld [vmem:[#allocation7 + $0x24] sm:$0xf]
    %v125 = vld [vmem:[#allocation7 + $0x28] sm:$0xf]
    %v126 = vld [vmem:[#allocation7 + $0x2c] sm:$0xf]
    %v127 = vld [vmem:[#allocation7 + $0x30] sm:$0xf]
    %v128 = vld [vmem:[#allocation7 + $0x34] sm:$0xf]
    %v129 = vld [vmem:[#allocation7 + $0x38] sm:$0xf]
    %v130 = vld [vmem:[#allocation7 + $0x3c] sm:$0xf]
    %v131 = vld [vmem:[%s3] sm:$0x1]
    %v133 = vlaneseq
    %v134 = vshrl.u32 %v133, 7
    %v135 = vsub.s32 0, %v134
    %v136 = vrot.slane %v131, %v135
    %v154 = vunpack.c.l.b16 %v99
    %v155 = vunpack.c.l.b16 %v100
    %v156 = vunpack.c.l.b16 %v101
    %v157 = vunpack.c.l.b16 %v102
    %v158 = vunpack.c.l.b16 %v103
    %v159 = vunpack.c.l.b16 %v104
    %v160 = vunpack.c.l.b16 %v105
    %v161 = vunpack.c.l.b16 %v106
    %v162 = vunpack.c.l.b16 %v107
    %v163 = vunpack.c.l.b16 %v108
    %v164 = vunpack.c.l.b16 %v109
    %v165 = vunpack.c.l.b16 %v110
    %v166 = vunpack.c.l.b16 %v111
    %v167 = vunpack.c.l.b16 %v112
    %v168 = vunpack.c.l.b16 %v113
    %v169 = vunpack.c.l.b16 %v114
    %v170 = vpack.c.b16 %v155, %v154
    %v171 = vpack.c.b16 %v157, %v156
    %v172 = vpack.c.b16 %v159, %v158
    %v173 = vpack.c.b16 %v161, %v160
    %v174 = vpack.c.b16 %v163, %v162
    %v175 = vpack.c.b16 %v165, %v164
    %v176 = vpack.c.b16 %v167, %v166
    %v177 = vpack.c.b16 %v169, %v168
    %v202 = vunpack.c.l.b16 %v115
    %v203 = vunpack.c.l.b16 %v116
    %v204 = vunpack.c.l.b16 %v117
    %v205 = vunpack.c.l.b16 %v118
    %v206 = vunpack.c.l.b16 %v119
    %v207 = vunpack.c.l.b16 %v120
    %v208 = vunpack.c.l.b16 %v121
    %v209 = vunpack.c.l.b16 %v122
    %v210 = vunpack.c.l.b16 %v123
    %v211 = vunpack.c.l.b16 %v124
    %v212 = vunpack.c.l.b16 %v125
    %v213 = vunpack.c.l.b16 %v126
    %v214 = vunpack.c.l.b16 %v127
    %v215 = vunpack.c.l.b16 %v128
    %v216 = vunpack.c.l.b16 %v129
    %v217 = vunpack.c.l.b16 %v130
    %v218 = vpack.c.b16 %v203, %v202
    %v219 = vpack.c.b16 %v205, %v204
    %v220 = vpack.c.b16 %v207, %v206
    %v221 = vpack.c.b16 %v209, %v208
    %v222 = vpack.c.b16 %v211, %v210
    %v223 = vpack.c.b16 %v213, %v212
    %v224 = vpack.c.b16 %v215, %v214
    %v225 = vpack.c.b16 %v217, %v216
    %234 = vmatprep.subr.bf16.mxu0 0
    %235 = vmatpush1.bf16.msra.mxu0 %v218
    %236 = vmatprep.subr.bf16.mxu0 0
    %237 = vmatpush1.bf16.msra.mxu0 %v219
    %238 = vmatprep.subr.bf16.mxu0 0
    %239 = vmatpush1.bf16.msra.mxu0 %v220
    %240 = vmatprep.subr.bf16.mxu0 0
    %241 = vmatpush1.bf16.msra.mxu0 %v221
    %242 = vmatprep.subr.bf16.mxu0 0
    %243 = vmatpush1.bf16.msra.mxu0 %v222
    %244 = vmatprep.subr.bf16.mxu0 0
    %245 = vmatpush1.bf16.msra.mxu0 %v223
    %246 = vmatprep.subr.bf16.mxu0 0
    %247 = vmatpush1.bf16.msra.mxu0 %v224
    %248 = vmatprep.subr.bf16.mxu0 0
    %249 = vmatpush1.bf16.msra.mxu0 %v225
    %250 = vmatprep.subr.bf16.mxu0 0
    %251 = vmatpush1.bf16.msra.mxu0 0
    %252 = vmatprep.subr.bf16.mxu0 0
    %253 = vmatpush1.bf16.msra.mxu0 0
    %254 = vmatprep.subr.bf16.mxu0 0
    %255 = vmatpush1.bf16.msra.mxu0 0
    %256 = vmatprep.subr.bf16.mxu0 0
    %257 = vmatpush1.bf16.msra.mxu0 0
    %258 = vmatprep.subr.bf16.mxu0 0
    %259 = vmatpush1.bf16.msra.mxu0 0
    %260 = vmatprep.subr.bf16.mxu0 0
    %261 = vmatpush1.bf16.msra.mxu0 0
    %262 = vmatprep.subr.bf16.mxu0 0
    %263 = vmatpush1.bf16.msra.mxu0 0
    %264 = vmatprep.subr.bf16.mxu0 0
    %265 = vmatpush1.bf16.msra.mxu0 0
    %266 = vmatprep.mubr.bf16.mxu0 0
    %267 = vmatmul.mubr.bf16.gmra.mrb[0].mxu0 %v170
    %v268 = vpop.f32.mrb[0].mxu0
    %v269 = vadd.f32 %v136, %v268
    %v270 = vpop.f32.mrb[0].mxu0
    %v271 = vpop.f32.mrb[0].mxu0
    %v272 = vadd.f32 %v136, %v271
    %v273 = vpop.f32.mrb[0].mxu0
    %274 = vmatprep.mubr.bf16.mxu0 0
    %275 = vmatmul.mubr.bf16.gmra.mrb[0].mxu0 %v171
    %v276 = vpop.f32.mrb[0].mxu0
    %v277 = vadd.f32 %v136, %v276
    %v278 = vpop.f32.mrb[0].mxu0
    %v279 = vpop.f32.mrb[0].mxu0
    %v280 = vadd.f32 %v136, %v279
    %v281 = vpop.f32.mrb[0].mxu0
    %282 = vmatprep.mubr.bf16.mxu0 0
    %283 = vmatmul.mubr.bf16.gmra.mrb[0].mxu0 %v172
    %v284 = vpop.f32.mrb[0].mxu0
    %v285 = vadd.f32 %v136, %v284
    %v286 = vpop.f32.mrb[0].mxu0
    %v287 = vpop.f32.mrb[0].mxu0
    %v288 = vadd.f32 %v136, %v287
    %v289 = vpop.f32.mrb[0].mxu0
    %290 = vmatprep.mubr.bf16.mxu0 0
    %291 = vmatmul.mubr.bf16.gmra.mrb[0].mxu0 %v173
    %v292 = vpop.f32.mrb[0].mxu0
    %v293 = vadd.f32 %v136, %v292
    %v294 = vpop.f32.mrb[0].mxu0
    %v295 = vpop.f32.mrb[0].mxu0
    %v296 = vadd.f32 %v136, %v295
    %v297 = vpop.f32.mrb[0].mxu0
    %298 = vmatprep.mubr.bf16.mxu0 0
    %299 = vmatmul.mubr.bf16.gmra.mrb[0].mxu0 %v174
    %v300 = vpop.f32.mrb[0].mxu0
    %v301 = vadd.f32 %v136, %v300
    %v302 = vpop.f32.mrb[0].mxu0
    %v303 = vpop.f32.mrb[0].mxu0
    %v304 = vadd.f32 %v136, %v303
    %v305 = vpop.f32.mrb[0].mxu0
    %306 = vmatprep.mubr.bf16.mxu0 0
    %307 = vmatmul.mubr.bf16.gmra.mrb[0].mxu0 %v175
    %v308 = vpop.f32.mrb[0].mxu0
    %v309 = vadd.f32 %v136, %v308
    %v310 = vpop.f32.mrb[0].mxu0
    %v311 = vpop.f32.mrb[0].mxu0
    %v312 = vadd.f32 %v136, %v311
    %v313 = vpop.f32.mrb[0].mxu0
    %314 = vmatprep.mubr.bf16.mxu0 0
    %315 = vmatmul.mubr.bf16.gmra.mrb[0].mxu0 %v176
    %v316 = vpop.f32.mrb[0].mxu0
    %v317 = vadd.f32 %v136, %v316
    %v318 = vpop.f32.mrb[0].mxu0
    %v319 = vpop.f32.mrb[0].mxu0
    %v320 = vadd.f32 %v136, %v319
    %v321 = vpop.f32.mrb[0].mxu0
    %322 = vmatprep.mubr.bf16.mxu0 0
    %323 = vmatmul.mubr.bf16.gmra.mrb[0].mxu0 %v177
    %v324 = vpop.f32.mrb[0].mxu0
    %v325 = vadd.f32 %v136, %v324
    %v326 = vpop.f32.mrb[0].mxu0
    %v327 = vpop.f32.mrb[0].mxu0
    %v328 = vadd.f32 %v136, %v327
    %v329 = vpop.f32.mrb[0].mxu0
    %330 = vdwg.mxu0
    %v331 = vlaneseq
    %v332 = vand.u32 %v331, 127
    %vm333 = vcmp.lt.s32.totalorder %v332, 32
    %v334 = vld [vmem:[#allocation2] sm:$0xf]
    %v335 = vld [vmem:[#allocation2 + $0x4] sm:$0xf]
    %v336 = vld [vmem:[#allocation2 + $0x8] sm:$0xf]
    %v337 = vld [vmem:[#allocation2 + $0xc] sm:$0xf]
    %v338 = vld [vmem:[#allocation2 + $0x10] sm:$0xf]
    %v339 = vld [vmem:[#allocation2 + $0x14] sm:$0xf]
    %v340 = vld [vmem:[#allocation2 + $0x18] sm:$0xf]
    %v341 = vld [vmem:[#allocation2 + $0x1c] sm:$0xf]
    %v342 = vld [vmem:[#allocation2 + $0x20] sm:$0xf]
    %v343 = vld [vmem:[#allocation2 + $0x24] sm:$0xf]
    %v344 = vld [vmem:[#allocation2 + $0x28] sm:$0xf]
    %v345 = vld [vmem:[#allocation2 + $0x2c] sm:$0xf]
    %v346 = vld [vmem:[#allocation2 + $0x30] sm:$0xf]
    %v347 = vld [vmem:[#allocation2 + $0x34] sm:$0xf]
    %v348 = vld [vmem:[#allocation2 + $0x38] sm:$0xf]
    %v349 = vld [vmem:[#allocation2 + $0x3c] sm:$0xf]
    %v350 = vsel %vm333, %v269, -inf
    %v351 = vsel %vm333, %v272, -inf
    %v352 = vsel %vm333, %v277, -inf
    %v353 = vsel %vm333, %v280, -inf
    %v354 = vsel %vm333, %v285, -inf
    %v355 = vsel %vm333, %v288, -inf
    %v356 = vsel %vm333, %v293, -inf
    %v357 = vsel %vm333, %v296, -inf
    %v358 = vsel %vm333, %v301, -inf
    %v359 = vsel %vm333, %v304, -inf
    %v360 = vsel %vm333, %v309, -inf
    %v361 = vsel %vm333, %v312, -inf
    %v362 = vsel %vm333, %v317, -inf
    %v363 = vsel %vm333, %v320, -inf
    %v364 = vsel %vm333, %v325, -inf
    %v365 = vsel %vm333, %v328, -inf
    %366 = vmax.xlane.f32.xlu0 %v350
    %v367 = vpop.xlane.xlu0 %366
    %368 = vmax.xlane.f32.xlu0 %v351
    %v369 = vpop.xlane.xlu0 %368
    %370 = vmax.xlane.f32.xlu0 %v352
    %v371 = vpop.xlane.xlu0 %370
    %372 = vmax.xlane.f32.xlu0 %v353
    %v373 = vpop.xlane.xlu0 %372
    %374 = vmax.xlane.f32.xlu0 %v354
    %v375 = vpop.xlane.xlu0 %374
    %376 = vmax.xlane.f32.xlu0 %v355
    %v377 = vpop.xlane.xlu0 %376
    %378 = vmax.xlane.f32.xlu0 %v356
    %v379 = vpop.xlane.xlu0 %378
    %380 = vmax.xlane.f32.xlu0 %v357
    %v381 = vpop.xlane.xlu0 %380
    %382 = vmax.xlane.f32.xlu0 %v358
    %v383 = vpop.xlane.xlu0 %382
    %384 = vmax.xlane.f32.xlu0 %v359
    %v385 = vpop.xlane.xlu0 %384
    %386 = vmax.xlane.f32.xlu0 %v360
    %v387 = vpop.xlane.xlu0 %386
    %388 = vmax.xlane.f32.xlu0 %v361
    %v389 = vpop.xlane.xlu0 %388
    %390 = vmax.xlane.f32.xlu0 %v362
    %v391 = vpop.xlane.xlu0 %390
    %392 = vmax.xlane.f32.xlu0 %v363
    %v393 = vpop.xlane.xlu0 %392
    %394 = vmax.xlane.f32.xlu0 %v364
    %v395 = vpop.xlane.xlu0 %394
    %396 = vmax.xlane.f32.xlu0 %v365
    %v397 = vpop.xlane.xlu0 %396
    %vm398 = vcmp.ge.f32.partialorder %v350, %v367
    %vm399 = vcmp.ge.f32.partialorder %v351, %v369
    %vm400 = vcmp.ge.f32.partialorder %v352, %v371
    %vm401 = vcmp.ge.f32.partialorder %v353, %v373
    %vm402 = vcmp.ge.f32.partialorder %v354, %v375
    %vm403 = vcmp.ge.f32.partialorder %v355, %v377
    %vm404 = vcmp.ge.f32.partialorder %v356, %v379
    %vm405 = vcmp.ge.f32.partialorder %v357, %v381
    %vm406 = vcmp.ge.f32.partialorder %v358, %v383
    %vm407 = vcmp.ge.f32.partialorder %v359, %v385
    %vm408 = vcmp.ge.f32.partialorder %v360, %v387
    %vm409 = vcmp.ge.f32.partialorder %v361, %v389
    %vm410 = vcmp.ge.f32.partialorder %v362, %v391
    %vm411 = vcmp.ge.f32.partialorder %v363, %v393
    %vm412 = vcmp.ge.f32.partialorder %v364, %v395
    %vm413 = vcmp.ge.f32.partialorder %v365, %v397
    %v414 = vsel %vm398, -inf, %v350
    %v415 = vsel %vm399, -inf, %v351
    %v416 = vsel %vm400, -inf, %v352
    %v417 = vsel %vm401, -inf, %v353
    %v418 = vsel %vm402, -inf, %v354
    %v419 = vsel %vm403, -inf, %v355
    %v420 = vsel %vm404, -inf, %v356
    %v421 = vsel %vm405, -inf, %v357
    %v422 = vsel %vm406, -inf, %v358
    %v423 = vsel %vm407, -inf, %v359
    %v424 = vsel %vm408, -inf, %v360
    %v425 = vsel %vm409, -inf, %v361
    %v426 = vsel %vm410, -inf, %v362
    %v427 = vsel %vm411, -inf, %v363
    %v428 = vsel %vm412, -inf, %v364
    %v429 = vsel %vm413, -inf, %v365
    %430 = vmax.xlane.f32.xlu0 %v414
    %v431 = vpop.xlane.xlu0 %430
    %432 = vmax.xlane.f32.xlu0 %v415
    %v433 = vpop.xlane.xlu0 %432
    %434 = vmax.xlane.f32.xlu0 %v416
    %v435 = vpop.xlane.xlu0 %434
    %436 = vmax.xlane.f32.xlu0 %v417
    %v437 = vpop.xlane.xlu0 %436
    %438 = vmax.xlane.f32.xlu0 %v418
    %v439 = vpop.xlane.xlu0 %438
    %440 = vmax.xlane.f32.xlu0 %v419
    %v441 = vpop.xlane.xlu0 %440
    %442 = vmax.xlane.f32.xlu0 %v420
    %v443 = vpop.xlane.xlu0 %442
    %444 = vmax.xlane.f32.xlu0 %v421
    %v445 = vpop.xlane.xlu0 %444
    %446 = vmax.xlane.f32.xlu0 %v422
    %v447 = vpop.xlane.xlu0 %446
    %448 = vmax.xlane.f32.xlu0 %v423
    %v449 = vpop.xlane.xlu0 %448
    %450 = vmax.xlane.f32.xlu0 %v424
    %v451 = vpop.xlane.xlu0 %450
    %452 = vmax.xlane.f32.xlu0 %v425
    %v453 = vpop.xlane.xlu0 %452
    %454 = vmax.xlane.f32.xlu0 %v426
    %v455 = vpop.xlane.xlu0 %454
    %456 = vmax.xlane.f32.xlu0 %v427
    %v457 = vpop.xlane.xlu0 %456
    %458 = vmax.xlane.f32.xlu0 %v428
    %v459 = vpop.xlane.xlu0 %458
    %460 = vmax.xlane.f32.xlu0 %v429
    %v461 = vpop.xlane.xlu0 %460
    %vm462 = vcmp.ge.f32.partialorder %v414, %v431
    %vm463 = vcmp.ge.f32.partialorder %v415, %v433
    %vm464 = vcmp.ge.f32.partialorder %v416, %v435
    %vm465 = vcmp.ge.f32.partialorder %v417, %v437
    %vm466 = vcmp.ge.f32.partialorder %v418, %v439
    %vm467 = vcmp.ge.f32.partialorder %v419, %v441
    %vm468 = vcmp.ge.f32.partialorder %v420, %v443
    %vm469 = vcmp.ge.f32.partialorder %v421, %v445
    %vm470 = vcmp.ge.f32.partialorder %v422, %v447
    %vm471 = vcmp.ge.f32.partialorder %v423, %v449
    %vm472 = vcmp.ge.f32.partialorder %v424, %v451
    %vm473 = vcmp.ge.f32.partialorder %v425, %v453
    %vm474 = vcmp.ge.f32.partialorder %v426, %v455
    %vm475 = vcmp.ge.f32.partialorder %v427, %v457
    %vm476 = vcmp.ge.f32.partialorder %v428, %v459
    %vm477 = vcmp.ge.f32.partialorder %v429, %v461
    %v478 = vsel %vm462, -inf, %v414
    %v479 = vsel %vm463, -inf, %v415
    %v480 = vsel %vm464, -inf, %v416
    %v481 = vsel %vm465, -inf, %v417
    %v482 = vsel %vm466, -inf, %v418
    %v483 = vsel %vm467, -inf, %v419
    %v484 = vsel %vm468, -inf, %v420
    %v485 = vsel %vm469, -inf, %v421
    %v486 = vsel %vm470, -inf, %v422
    %v487 = vsel %vm471, -inf, %v423
    %v488 = vsel %vm472, -inf, %v424
    %v489 = vsel %vm473, -inf, %v425
    %v490 = vsel %vm474, -inf, %v426
    %v491 = vsel %vm475, -inf, %v427
    %v492 = vsel %vm476, -inf, %v428
    %v493 = vsel %vm477, -inf, %v429
    %494 = vmax.xlane.f32.xlu0 %v478
    %v495 = vpop.xlane.xlu0 %494
    %496 = vmax.xlane.f32.xlu0 %v479
    %v497 = vpop.xlane.xlu0 %496
    %498 = vmax.xlane.f32.xlu0 %v480
    %v499 = vpop.xlane.xlu0 %498
    %500 = vmax.xlane.f32.xlu0 %v481
    %v501 = vpop.xlane.xlu0 %500
    %502 = vmax.xlane.f32.xlu0 %v482
    %v503 = vpop.xlane.xlu0 %502
    %504 = vmax.xlane.f32.xlu0 %v483
    %v505 = vpop.xlane.xlu0 %504
    %506 = vmax.xlane.f32.xlu0 %v484
    %v507 = vpop.xlane.xlu0 %506
    %508 = vmax.xlane.f32.xlu0 %v485
    %v509 = vpop.xlane.xlu0 %508
    %510 = vmax.xlane.f32.xlu0 %v486
    %v511 = vpop.xlane.xlu0 %510
    %512 = vmax.xlane.f32.xlu0 %v487
    %v513 = vpop.xlane.xlu0 %512
    %514 = vmax.xlane.f32.xlu0 %v488
    %v515 = vpop.xlane.xlu0 %514
    %516 = vmax.xlane.f32.xlu0 %v489
    %v517 = vpop.xlane.xlu0 %516
    %518 = vmax.xlane.f32.xlu0 %v490
    %v519 = vpop.xlane.xlu0 %518
    %520 = vmax.xlane.f32.xlu0 %v491
    %v521 = vpop.xlane.xlu0 %520
    %522 = vmax.xlane.f32.xlu0 %v492
    %v523 = vpop.xlane.xlu0 %522
    %524 = vmax.xlane.f32.xlu0 %v493
    %v525 = vpop.xlane.xlu0 %524
    %vm526 = vcmp.ge.f32.partialorder %v478, %v495
    %vm527 = vcmp.ge.f32.partialorder %v479, %v497
    %vm528 = vcmp.ge.f32.partialorder %v480, %v499
    %vm529 = vcmp.ge.f32.partialorder %v481, %v501
    %vm530 = vcmp.ge.f32.partialorder %v482, %v503
    %vm531 = vcmp.ge.f32.partialorder %v483, %v505
    %vm532 = vcmp.ge.f32.partialorder %v484, %v507
    %vm533 = vcmp.ge.f32.partialorder %v485, %v509
    %vm534 = vcmp.ge.f32.partialorder %v486, %v511
    %vm535 = vcmp.ge.f32.partialorder %v487, %v513
    %vm536 = vcmp.ge.f32.partialorder %v488, %v515
    %vm537 = vcmp.ge.f32.partialorder %v489, %v517
    %vm538 = vcmp.ge.f32.partialorder %v490, %v519
    %vm539 = vcmp.ge.f32.partialorder %v491, %v521
    %vm540 = vcmp.ge.f32.partialorder %v492, %v523
    %vm541 = vcmp.ge.f32.partialorder %v493, %v525
    %v542 = vsel %vm526, -inf, %v478
    %v543 = vsel %vm527, -inf, %v479
    %v544 = vsel %vm528, -inf, %v480
    %v545 = vsel %vm529, -inf, %v481
    %v546 = vsel %vm530, -inf, %v482
    %v547 = vsel %vm531, -inf, %v483
    %v548 = vsel %vm532, -inf, %v484
    %v549 = vsel %vm533, -inf, %v485
    %v550 = vsel %vm534, -inf, %v486
    %v551 = vsel %vm535, -inf, %v487
    %v552 = vsel %vm536, -inf, %v488
    %v553 = vsel %vm537, -inf, %v489
    %v554 = vsel %vm538, -inf, %v490
    %v555 = vsel %vm539, -inf, %v491
    %v556 = vsel %vm540, -inf, %v492
    %v557 = vsel %vm541, -inf, %v493
    %558 = vmax.xlane.f32.xlu0 %v542
    %v559 = vpop.xlane.xlu0 %558
    %560 = vmax.xlane.f32.xlu0 %v543
    %v561 = vpop.xlane.xlu0 %560
    %562 = vmax.xlane.f32.xlu0 %v544
    %v563 = vpop.xlane.xlu0 %562
    %564 = vmax.xlane.f32.xlu0 %v545
    %v565 = vpop.xlane.xlu0 %564
    %566 = vmax.xlane.f32.xlu0 %v546
    %v567 = vpop.xlane.xlu0 %566
    %568 = vmax.xlane.f32.xlu0 %v547
    %v569 = vpop.xlane.xlu0 %568
    %570 = vmax.xlane.f32.xlu0 %v548
    %v571 = vpop.xlane.xlu0 %570
    %572 = vmax.xlane.f32.xlu0 %v549
    %v573 = vpop.xlane.xlu0 %572
    %574 = vmax.xlane.f32.xlu0 %v550
    %v575 = vpop.xlane.xlu0 %574
    %576 = vmax.xlane.f32.xlu0 %v551
    %v577 = vpop.xlane.xlu0 %576
    %578 = vmax.xlane.f32.xlu0 %v552
    %v579 = vpop.xlane.xlu0 %578
    %580 = vmax.xlane.f32.xlu0 %v553
    %v581 = vpop.xlane.xlu0 %580
    %582 = vmax.xlane.f32.xlu0 %v554
    %v583 = vpop.xlane.xlu0 %582
    %584 = vmax.xlane.f32.xlu0 %v555
    %v585 = vpop.xlane.xlu0 %584
    %586 = vmax.xlane.f32.xlu0 %v556
    %v587 = vpop.xlane.xlu0 %586
    %588 = vmax.xlane.f32.xlu0 %v557
    %v589 = vpop.xlane.xlu0 %588
    %vm590 = vcmp.ge.f32.partialorder %v542, %v559
    %vm591 = vcmp.ge.f32.partialorder %v543, %v561
    %vm592 = vcmp.ge.f32.partialorder %v544, %v563
    %vm593 = vcmp.ge.f32.partialorder %v545, %v565
    %vm594 = vcmp.ge.f32.partialorder %v546, %v567
    %vm595 = vcmp.ge.f32.partialorder %v547, %v569
    %vm596 = vcmp.ge.f32.partialorder %v548, %v571
    %vm597 = vcmp.ge.f32.partialorder %v549, %v573
    %vm598 = vcmp.ge.f32.partialorder %v550, %v575
    %vm599 = vcmp.ge.f32.partialorder %v551, %v577
    %vm600 = vcmp.ge.f32.partialorder %v552, %v579
    %vm601 = vcmp.ge.f32.partialorder %v553, %v581
    %vm602 = vcmp.ge.f32.partialorder %v554, %v583
    %vm603 = vcmp.ge.f32.partialorder %v555, %v585
    %vm604 = vcmp.ge.f32.partialorder %v556, %v587
    %vm605 = vcmp.ge.f32.partialorder %v557, %v589
    %v606 = vsel %vm590, -inf, %v542
    %v607 = vsel %vm591, -inf, %v543
    %v608 = vsel %vm592, -inf, %v544
    %v609 = vsel %vm593, -inf, %v545
    %v610 = vsel %vm594, -inf, %v546
    %v611 = vsel %vm595, -inf, %v547
    %v612 = vsel %vm596, -inf, %v548
    %v613 = vsel %vm597, -inf, %v549
    %v614 = vsel %vm598, -inf, %v550
    %v615 = vsel %vm599, -inf, %v551
    %v616 = vsel %vm600, -inf, %v552
    %v617 = vsel %vm601, -inf, %v553
    %v618 = vsel %vm602, -inf, %v554
    %v619 = vsel %vm603, -inf, %v555
    %v620 = vsel %vm604, -inf, %v556
    %v621 = vsel %vm605, -inf, %v557
    %622 = vmax.xlane.f32.xlu0 %v606
    %v623 = vpop.xlane.xlu0 %622
    %624 = vmax.xlane.f32.xlu0 %v607
    %v625 = vpop.xlane.xlu0 %624
    %626 = vmax.xlane.f32.xlu0 %v608
    %v627 = vpop.xlane.xlu0 %626
    %628 = vmax.xlane.f32.xlu0 %v609
    %v629 = vpop.xlane.xlu0 %628
    %630 = vmax.xlane.f32.xlu0 %v610
    %v631 = vpop.xlane.xlu0 %630
    %632 = vmax.xlane.f32.xlu0 %v611
    %v633 = vpop.xlane.xlu0 %632
    %634 = vmax.xlane.f32.xlu0 %v612
    %v635 = vpop.xlane.xlu0 %634
    %636 = vmax.xlane.f32.xlu0 %v613
    %v637 = vpop.xlane.xlu0 %636
    %638 = vmax.xlane.f32.xlu0 %v614
    %v639 = vpop.xlane.xlu0 %638
    %640 = vmax.xlane.f32.xlu0 %v615
    %v641 = vpop.xlane.xlu0 %640
    %642 = vmax.xlane.f32.xlu0 %v616
    %v643 = vpop.xlane.xlu0 %642
    %644 = vmax.xlane.f32.xlu0 %v617
    %v645 = vpop.xlane.xlu0 %644
    %646 = vmax.xlane.f32.xlu0 %v618
    %v647 = vpop.xlane.xlu0 %646
    %648 = vmax.xlane.f32.xlu0 %v619
    %v649 = vpop.xlane.xlu0 %648
    %650 = vmax.xlane.f32.xlu0 %v620
    %v651 = vpop.xlane.xlu0 %650
    %652 = vmax.xlane.f32.xlu0 %v621
    %v653 = vpop.xlane.xlu0 %652
    %vm654 = vcmp.ge.f32.partialorder %v606, %v623
    %vm655 = vcmp.ge.f32.partialorder %v607, %v625
    %vm656 = vcmp.ge.f32.partialorder %v608, %v627
    %vm657 = vcmp.ge.f32.partialorder %v609, %v629
    %vm658 = vcmp.ge.f32.partialorder %v610, %v631
    %vm659 = vcmp.ge.f32.partialorder %v611, %v633
    %vm660 = vcmp.ge.f32.partialorder %v612, %v635
    %vm661 = vcmp.ge.f32.partialorder %v613, %v637
    %vm662 = vcmp.ge.f32.partialorder %v614, %v639
    %vm663 = vcmp.ge.f32.partialorder %v615, %v641
    %vm664 = vcmp.ge.f32.partialorder %v616, %v643
    %vm665 = vcmp.ge.f32.partialorder %v617, %v645
    %vm666 = vcmp.ge.f32.partialorder %v618, %v647
    %vm667 = vcmp.ge.f32.partialorder %v619, %v649
    %vm668 = vcmp.ge.f32.partialorder %v620, %v651
    %vm669 = vcmp.ge.f32.partialorder %v621, %v653
    %v670 = vsel %vm654, -inf, %v606
    %v671 = vsel %vm655, -inf, %v607
    %v672 = vsel %vm656, -inf, %v608
    %v673 = vsel %vm657, -inf, %v609
    %v674 = vsel %vm658, -inf, %v610
    %v675 = vsel %vm659, -inf, %v611
    %v676 = vsel %vm660, -inf, %v612
    %v677 = vsel %vm661, -inf, %v613
    %v678 = vsel %vm662, -inf, %v614
    %v679 = vsel %vm663, -inf, %v615
    %v680 = vsel %vm664, -inf, %v616
    %v681 = vsel %vm665, -inf, %v617
    %v682 = vsel %vm666, -inf, %v618
    %v683 = vsel %vm667, -inf, %v619
    %v684 = vsel %vm668, -inf, %v620
    %v685 = vsel %vm669, -inf, %v621
    %686 = vmax.xlane.f32.xlu0 %v670
    %v687 = vpop.xlane.xlu0 %686
    %688 = vmax.xlane.f32.xlu0 %v671
    %v689 = vpop.xlane.xlu0 %688
    %690 = vmax.xlane.f32.xlu0 %v672
    %v691 = vpop.xlane.xlu0 %690
    %692 = vmax.xlane.f32.xlu0 %v673
    %v693 = vpop.xlane.xlu0 %692
    %694 = vmax.xlane.f32.xlu0 %v674
    %v695 = vpop.xlane.xlu0 %694
    %696 = vmax.xlane.f32.xlu0 %v675
    %v697 = vpop.xlane.xlu0 %696
    %698 = vmax.xlane.f32.xlu0 %v676
    %v699 = vpop.xlane.xlu0 %698
    %700 = vmax.xlane.f32.xlu0 %v677
    %v701 = vpop.xlane.xlu0 %700
    %702 = vmax.xlane.f32.xlu0 %v678
    %v703 = vpop.xlane.xlu0 %702
    %704 = vmax.xlane.f32.xlu0 %v679
    %v705 = vpop.xlane.xlu0 %704
    %706 = vmax.xlane.f32.xlu0 %v680
    %v707 = vpop.xlane.xlu0 %706
    %708 = vmax.xlane.f32.xlu0 %v681
    %v709 = vpop.xlane.xlu0 %708
    %710 = vmax.xlane.f32.xlu0 %v682
    %v711 = vpop.xlane.xlu0 %710
    %712 = vmax.xlane.f32.xlu0 %v683
    %v713 = vpop.xlane.xlu0 %712
    %714 = vmax.xlane.f32.xlu0 %v684
    %v715 = vpop.xlane.xlu0 %714
    %716 = vmax.xlane.f32.xlu0 %v685
    %v717 = vpop.xlane.xlu0 %716
    %vm718 = vcmp.ge.f32.partialorder %v670, %v687
    %vm719 = vcmp.ge.f32.partialorder %v671, %v689
    %vm720 = vcmp.ge.f32.partialorder %v672, %v691
    %vm721 = vcmp.ge.f32.partialorder %v673, %v693
    %vm722 = vcmp.ge.f32.partialorder %v674, %v695
    %vm723 = vcmp.ge.f32.partialorder %v675, %v697
    %vm724 = vcmp.ge.f32.partialorder %v676, %v699
    %vm725 = vcmp.ge.f32.partialorder %v677, %v701
    %vm726 = vcmp.ge.f32.partialorder %v678, %v703
    %vm727 = vcmp.ge.f32.partialorder %v679, %v705
    %vm728 = vcmp.ge.f32.partialorder %v680, %v707
    %vm729 = vcmp.ge.f32.partialorder %v681, %v709
    %vm730 = vcmp.ge.f32.partialorder %v682, %v711
    %vm731 = vcmp.ge.f32.partialorder %v683, %v713
    %vm732 = vcmp.ge.f32.partialorder %v684, %v715
    %vm733 = vcmp.ge.f32.partialorder %v685, %v717
    %v734 = vsel %vm718, -inf, %v670
    %v735 = vsel %vm719, -inf, %v671
    %v736 = vsel %vm720, -inf, %v672
    %v737 = vsel %vm721, -inf, %v673
    %v738 = vsel %vm722, -inf, %v674
    %v739 = vsel %vm723, -inf, %v675
    %v740 = vsel %vm724, -inf, %v676
    %v741 = vsel %vm725, -inf, %v677
    %v742 = vsel %vm726, -inf, %v678
    %v743 = vsel %vm727, -inf, %v679
    %v744 = vsel %vm728, -inf, %v680
    %v745 = vsel %vm729, -inf, %v681
    %v746 = vsel %vm730, -inf, %v682
    %v747 = vsel %vm731, -inf, %v683
    %v748 = vsel %vm732, -inf, %v684
    %v749 = vsel %vm733, -inf, %v685
    %750 = vmax.xlane.f32.xlu0 %v734
    %v751 = vpop.xlane.xlu0 %750
    %752 = vmax.xlane.f32.xlu0 %v735
    %v753 = vpop.xlane.xlu0 %752
    %754 = vmax.xlane.f32.xlu0 %v736
    %v755 = vpop.xlane.xlu0 %754
    %756 = vmax.xlane.f32.xlu0 %v737
    %v757 = vpop.xlane.xlu0 %756
    %758 = vmax.xlane.f32.xlu0 %v738
    %v759 = vpop.xlane.xlu0 %758
    %760 = vmax.xlane.f32.xlu0 %v739
    %v761 = vpop.xlane.xlu0 %760
    %762 = vmax.xlane.f32.xlu0 %v740
    %v763 = vpop.xlane.xlu0 %762
    %764 = vmax.xlane.f32.xlu0 %v741
    %v765 = vpop.xlane.xlu0 %764
    %766 = vmax.xlane.f32.xlu0 %v742
    %v767 = vpop.xlane.xlu0 %766
    %768 = vmax.xlane.f32.xlu0 %v743
    %v769 = vpop.xlane.xlu0 %768
    %770 = vmax.xlane.f32.xlu0 %v744
    %v771 = vpop.xlane.xlu0 %770
    %772 = vmax.xlane.f32.xlu0 %v745
    %v773 = vpop.xlane.xlu0 %772
    %774 = vmax.xlane.f32.xlu0 %v746
    %v775 = vpop.xlane.xlu0 %774
    %776 = vmax.xlane.f32.xlu0 %v747
    %v777 = vpop.xlane.xlu0 %776
    %778 = vmax.xlane.f32.xlu0 %v748
    %v779 = vpop.xlane.xlu0 %778
    %780 = vmax.xlane.f32.xlu0 %v749
    %v781 = vpop.xlane.xlu0 %780
    %vm782 = vcmp.ge.f32.partialorder %v734, %v751
    %vm783 = vcmp.ge.f32.partialorder %v735, %v753
    %vm784 = vcmp.ge.f32.partialorder %v736, %v755
    %vm785 = vcmp.ge.f32.partialorder %v737, %v757
    %vm786 = vcmp.ge.f32.partialorder %v738, %v759
    %vm787 = vcmp.ge.f32.partialorder %v739, %v761
    %vm788 = vcmp.ge.f32.partialorder %v740, %v763
    %vm789 = vcmp.ge.f32.partialorder %v741, %v765
    %vm790 = vcmp.ge.f32.partialorder %v742, %v767
    %vm791 = vcmp.ge.f32.partialorder %v743, %v769
    %vm792 = vcmp.ge.f32.partialorder %v744, %v771
    %vm793 = vcmp.ge.f32.partialorder %v745, %v773
    %vm794 = vcmp.ge.f32.partialorder %v746, %v775
    %vm795 = vcmp.ge.f32.partialorder %v747, %v777
    %vm796 = vcmp.ge.f32.partialorder %v748, %v779
    %vm797 = vcmp.ge.f32.partialorder %v749, %v781
    %v798 = vsel %vm782, -inf, %v734
    %v799 = vsel %vm783, -inf, %v735
    %v800 = vsel %vm784, -inf, %v736
    %v801 = vsel %vm785, -inf, %v737
    %v802 = vsel %vm786, -inf, %v738
    %v803 = vsel %vm787, -inf, %v739
    %v804 = vsel %vm788, -inf, %v740
    %v805 = vsel %vm789, -inf, %v741
    %v806 = vsel %vm790, -inf, %v742
    %v807 = vsel %vm791, -inf, %v743
    %v808 = vsel %vm792, -inf, %v744
    %v809 = vsel %vm793, -inf, %v745
    %v810 = vsel %vm794, -inf, %v746
    %v811 = vsel %vm795, -inf, %v747
    %v812 = vsel %vm796, -inf, %v748
    %v813 = vsel %vm797, -inf, %v749
    %814 = vmax.xlane.f32.xlu0 %v798
    %v815 = vpop.xlane.xlu0 %814
    %816 = vmax.xlane.f32.xlu0 %v799
    %v817 = vpop.xlane.xlu0 %816
    %818 = vmax.xlane.f32.xlu0 %v800
    %v819 = vpop.xlane.xlu0 %818
    %820 = vmax.xlane.f32.xlu0 %v801
    %v821 = vpop.xlane.xlu0 %820
    %822 = vmax.xlane.f32.xlu0 %v802
    %v823 = vpop.xlane.xlu0 %822
    %824 = vmax.xlane.f32.xlu0 %v803
    %v825 = vpop.xlane.xlu0 %824
    %826 = vmax.xlane.f32.xlu0 %v804
    %v827 = vpop.xlane.xlu0 %826
    %828 = vmax.xlane.f32.xlu0 %v805
    %v829 = vpop.xlane.xlu0 %828
    %830 = vmax.xlane.f32.xlu0 %v806
    %v831 = vpop.xlane.xlu0 %830
    %832 = vmax.xlane.f32.xlu0 %v807
    %v833 = vpop.xlane.xlu0 %832
    %834 = vmax.xlane.f32.xlu0 %v808
    %v835 = vpop.xlane.xlu0 %834
    %836 = vmax.xlane.f32.xlu0 %v809
    %v837 = vpop.xlane.xlu0 %836
    %838 = vmax.xlane.f32.xlu0 %v810
    %v839 = vpop.xlane.xlu0 %838
    %840 = vmax.xlane.f32.xlu0 %v811
    %v841 = vpop.xlane.xlu0 %840
    %842 = vmax.xlane.f32.xlu0 %v812
    %v843 = vpop.xlane.xlu0 %842
    %844 = vmax.xlane.f32.xlu0 %v813
    %v845 = vpop.xlane.xlu0 %844
    %vm846 = vcmp.ge.f32.partialorder %v269, %v815
    %vm847 = vcmp.ge.f32.partialorder %v272, %v817
    %vm848 = vcmp.ge.f32.partialorder %v277, %v819
    %vm849 = vcmp.ge.f32.partialorder %v280, %v821
    %vm850 = vcmp.ge.f32.partialorder %v285, %v823
    %vm851 = vcmp.ge.f32.partialorder %v288, %v825
    %vm852 = vcmp.ge.f32.partialorder %v293, %v827
    %vm853 = vcmp.ge.f32.partialorder %v296, %v829
    %vm854 = vcmp.ge.f32.partialorder %v301, %v831
    %vm855 = vcmp.ge.f32.partialorder %v304, %v833
    %vm856 = vcmp.ge.f32.partialorder %v309, %v835
    %vm857 = vcmp.ge.f32.partialorder %v312, %v837
    %vm858 = vcmp.ge.f32.partialorder %v317, %v839
    %vm859 = vcmp.ge.f32.partialorder %v320, %v841
    %vm860 = vcmp.ge.f32.partialorder %v325, %v843
    %vm861 = vcmp.ge.f32.partialorder %v328, %v845
    %v862 = vsel %vm846, %v269, 0.0
    %v863 = vsel %vm847, %v272, 0.0
    %v864 = vsel %vm848, %v277, 0.0
    %v865 = vsel %vm849, %v280, 0.0
    %v866 = vsel %vm850, %v285, 0.0
    %v867 = vsel %vm851, %v288, 0.0
    %v868 = vsel %vm852, %v293, 0.0
    %v869 = vsel %vm853, %v296, 0.0
    %v870 = vsel %vm854, %v301, 0.0
    %v871 = vsel %vm855, %v304, 0.0
    %v872 = vsel %vm856, %v309, 0.0
    %v873 = vsel %vm857, %v312, 0.0
    %v874 = vsel %vm858, %v317, 0.0
    %v875 = vsel %vm859, %v320, 0.0
    %v876 = vsel %vm860, %v325, 0.0
    %v877 = vsel %vm861, %v328, 0.0
    %v878 = vpack.c.bf16 %v863, %v862
    %v879 = vpack.c.bf16 %v865, %v864
    %v880 = vpack.c.bf16 %v867, %v866
    %v881 = vpack.c.bf16 %v869, %v868
    %v882 = vpack.c.bf16 %v871, %v870
    %v883 = vpack.c.bf16 %v873, %v872
    %v884 = vpack.c.bf16 %v875, %v874
    %v885 = vpack.c.bf16 %v877, %v876
    %v902 = vunpack.c.l.b16 %v334
    %v903 = vunpack.c.l.b16 %v335
    %v904 = vunpack.c.l.b16 %v336
    %v905 = vunpack.c.l.b16 %v337
    %v906 = vunpack.c.l.b16 %v338
    %v907 = vunpack.c.l.b16 %v339
    %v908 = vunpack.c.l.b16 %v340
    %v909 = vunpack.c.l.b16 %v341
    %v910 = vunpack.c.l.b16 %v342
    %v911 = vunpack.c.l.b16 %v343
    %v912 = vunpack.c.l.b16 %v344
    %v913 = vunpack.c.l.b16 %v345
    %v914 = vunpack.c.l.b16 %v346
    %v915 = vunpack.c.l.b16 %v347
    %v916 = vunpack.c.l.b16 %v348
    %v917 = vunpack.c.l.b16 %v349
    %v918 = vpack.c.b16 %v903, %v902
    %v919 = vpack.c.b16 %v905, %v904
    %v920 = vpack.c.b16 %v907, %v906
    %v921 = vpack.c.b16 %v909, %v908
    %v922 = vpack.c.b16 %v911, %v910
    %v923 = vpack.c.b16 %v913, %v912
    %v924 = vpack.c.b16 %v915, %v914
    %v925 = vpack.c.b16 %v917, %v916
    %934 = vmatprep.subr.bf16.mxu0 0
    %935 = vmatpush1.bf16.msra.mxu0 %v878
    %936 = vmatprep.subr.bf16.mxu0 0
    %937 = vmatpush1.bf16.msra.mxu0 %v879
    %938 = vmatprep.subr.bf16.mxu0 0
    %939 = vmatpush1.bf16.msra.mxu0 %v880
    %940 = vmatprep.subr.bf16.mxu0 0
    %941 = vmatpush1.bf16.msra.mxu0 %v881
    %942 = vmatprep.subr.bf16.mxu0 0
    %943 = vmatpush1.bf16.msra.mxu0 %v882
    %944 = vmatprep.subr.bf16.mxu0 0
    %945 = vmatpush1.bf16.msra.mxu0 %v883
    %946 = vmatprep.subr.bf16.mxu0 0
    %947 = vmatpush1.bf16.msra.mxu0 %v884
    %948 = vmatprep.subr.bf16.mxu0 0
    %949 = vmatpush1.bf16.msra.mxu0 %v885
    %950 = vmatprep.subr.bf16.mxu0 0
    %951 = vmatpush1.bf16.msra.mxu0 0
    %952 = vmatprep.subr.bf16.mxu0 0
    %953 = vmatpush1.bf16.msra.mxu0 0
    %954 = vmatprep.subr.bf16.mxu0 0
    %955 = vmatpush1.bf16.msra.mxu0 0
    %956 = vmatprep.subr.bf16.mxu0 0
    %957 = vmatpush1.bf16.msra.mxu0 0
    %958 = vmatprep.subr.bf16.mxu0 0
    %959 = vmatpush1.bf16.msra.mxu0 0
    %960 = vmatprep.subr.bf16.mxu0 0
    %961 = vmatpush1.bf16.msra.mxu0 0
    %962 = vmatprep.subr.bf16.mxu0 0
    %963 = vmatpush1.bf16.msra.mxu0 0
    %964 = vmatprep.subr.bf16.mxu0 0
    %965 = vmatpush1.bf16.msra.mxu0 0
    %966 = vmatprep.mubr.bf16.mxu0 0
    %967 = vmatmul.mubr.bf16.gmra.mrb[0].mxu0 %v918
    %v968 = vpop.f32.mrb[0].mxu0
    %v969 = vadd.f32 0.0, %v968
    %v970 = vpop.f32.mrb[0].mxu0
    %v971 = vpop.f32.mrb[0].mxu0
    %v972 = vadd.f32 0.0, %v971
    %v973 = vpop.f32.mrb[0].mxu0
    %974 = vmatprep.mubr.bf16.mxu0 0
    %975 = vmatmul.mubr.bf16.gmra.mrb[0].mxu0 %v919
    %v976 = vpop.f32.mrb[0].mxu0
    %v977 = vadd.f32 0.0, %v976
    %v978 = vpop.f32.mrb[0].mxu0
    %v979 = vpop.f32.mrb[0].mxu0
    %v980 = vadd.f32 0.0, %v979
    %v981 = vpop.f32.mrb[0].mxu0
    %982 = vmatprep.mubr.bf16.mxu0 0
    %983 = vmatmul.mubr.bf16.gmra.mrb[0].mxu0 %v920
    %v984 = vpop.f32.mrb[0].mxu0
    %v985 = vadd.f32 0.0, %v984
    %v986 = vpop.f32.mrb[0].mxu0
    %v987 = vpop.f32.mrb[0].mxu0
    %v988 = vadd.f32 0.0, %v987
    %v989 = vpop.f32.mrb[0].mxu0
    %990 = vmatprep.mubr.bf16.mxu0 0
    %991 = vmatmul.mubr.bf16.gmra.mrb[0].mxu0 %v921
    %v992 = vpop.f32.mrb[0].mxu0
    %v993 = vadd.f32 0.0, %v992
    %v994 = vpop.f32.mrb[0].mxu0
    %v995 = vpop.f32.mrb[0].mxu0
    %v996 = vadd.f32 0.0, %v995
    %v997 = vpop.f32.mrb[0].mxu0
    %998 = vmatprep.mubr.bf16.mxu0 0
    %999 = vmatmul.mubr.bf16.gmra.mrb[0].mxu0 %v922
    %v1000 = vpop.f32.mrb[0].mxu0
    %v1001 = vadd.f32 0.0, %v1000
    %v1002 = vpop.f32.mrb[0].mxu0
    %v1003 = vpop.f32.mrb[0].mxu0
    %v1004 = vadd.f32 0.0, %v1003
    %v1005 = vpop.f32.mrb[0].mxu0
    %1006 = vmatprep.mubr.bf16.mxu0 0
    %1007 = vmatmul.mubr.bf16.gmra.mrb[0].mxu0 %v923
    %v1008 = vpop.f32.mrb[0].mxu0
    %v1009 = vadd.f32 0.0, %v1008
    %v1010 = vpop.f32.mrb[0].mxu0
    %v1011 = vpop.f32.mrb[0].mxu0
    %v1012 = vadd.f32 0.0, %v1011
    %v1013 = vpop.f32.mrb[0].mxu0
    %1014 = vmatprep.mubr.bf16.mxu0 0
    %1015 = vmatmul.mubr.bf16.gmra.mrb[0].mxu0 %v924
    %v1016 = vpop.f32.mrb[0].mxu0
    %v1017 = vadd.f32 0.0, %v1016
    %v1018 = vpop.f32.mrb[0].mxu0
    %v1019 = vpop.f32.mrb[0].mxu0
    %v1020 = vadd.f32 0.0, %v1019
    %v1021 = vpop.f32.mrb[0].mxu0
    %1022 = vmatprep.mubr.bf16.mxu0 0
    %1023 = vmatmul.mubr.bf16.gmra.mrb[0].mxu0 %v925
    %v1024 = vpop.f32.mrb[0].mxu0
    %v1025 = vadd.f32 0.0, %v1024
    %v1026 = vpop.f32.mrb[0].mxu0
    %v1027 = vpop.f32.mrb[0].mxu0
    %v1028 = vadd.f32 0.0, %v1027
    %v1029 = vpop.f32.mrb[0].mxu0
    %1030 = vdwg.mxu0
    %v1031 = vpack.c.bf16 %v972, %v969
    %v1032 = vpack.c.bf16 %v980, %v977
    %v1033 = vpack.c.bf16 %v988, %v985
    %v1034 = vpack.c.bf16 %v996, %v993
    %v1035 = vpack.c.bf16 %v1004, %v1001
    %v1036 = vpack.c.bf16 %v1012, %v1009
    %v1037 = vpack.c.bf16 %v1020, %v1017
    %v1038 = vpack.c.bf16 %v1028, %v1025
    %v1039 = vld [vmem:[#allocation8] sm:$0xf]
    %v1040 = vld [vmem:[#allocation8 + $0x4] sm:$0xf]
    %v1041 = vld [vmem:[#allocation8 + $0x8] sm:$0xf]
    %v1042 = vld [vmem:[#allocation8 + $0xc] sm:$0xf]
    %v1043 = vld [vmem:[#allocation8 + $0x10] sm:$0xf]
    %v1044 = vld [vmem:[#allocation8 + $0x14] sm:$0xf]
    %v1045 = vld [vmem:[#allocation8 + $0x18] sm:$0xf]
    %v1046 = vld [vmem:[#allocation8 + $0x1c] sm:$0xf]
    %v1047 = vld [vmem:[#allocation8 + $0x20] sm:$0xf]
    %v1048 = vld [vmem:[#allocation8 + $0x24] sm:$0xf]
    %v1049 = vld [vmem:[#allocation8 + $0x28] sm:$0xf]
    %v1050 = vld [vmem:[#allocation8 + $0x2c] sm:$0xf]
    %v1051 = vld [vmem:[#allocation8 + $0x30] sm:$0xf]
    %v1052 = vld [vmem:[#allocation8 + $0x34] sm:$0xf]
    %v1053 = vld [vmem:[#allocation8 + $0x38] sm:$0xf]
    %v1054 = vld [vmem:[#allocation8 + $0x3c] sm:$0xf]
    %v1055 = vld [vmem:[#allocation8 + $0x40] sm:$0xf]
    %v1056 = vld [vmem:[#allocation8 + $0x44] sm:$0xf]
    %v1057 = vld [vmem:[#allocation8 + $0x48] sm:$0xf]
    %v1058 = vld [vmem:[#allocation8 + $0x4c] sm:$0xf]
    %v1059 = vld [vmem:[#allocation8 + $0x50] sm:$0xf]
    %v1060 = vld [vmem:[#allocation8 + $0x54] sm:$0xf]
    %v1061 = vld [vmem:[#allocation8 + $0x58] sm:$0xf]
    %v1062 = vld [vmem:[#allocation8 + $0x5c] sm:$0xf]
    %v1063 = vld [vmem:[#allocation8 + $0x60] sm:$0xf]
    %v1064 = vld [vmem:[#allocation8 + $0x64] sm:$0xf]
    %v1065 = vld [vmem:[#allocation8 + $0x68] sm:$0xf]
    %v1066 = vld [vmem:[#allocation8 + $0x6c] sm:$0xf]
    %v1067 = vld [vmem:[#allocation8 + $0x70] sm:$0xf]
    %v1068 = vld [vmem:[#allocation8 + $0x74] sm:$0xf]
    %v1069 = vld [vmem:[#allocation8 + $0x78] sm:$0xf]
    %v1070 = vld [vmem:[#allocation8 + $0x7c] sm:$0xf]
    %v1071 = vld [vmem:[%s5] sm:$0x1]
    %v1073 = vlaneseq
    %v1074 = vshrl.u32 %v1073, 7
    %v1075 = vsub.s32 0, %v1074
    %v1076 = vrot.slane %v1071, %v1075
    %v1110 = vunpack.c.l.b16 %v1039
    %v1111 = vunpack.c.l.b16 %v1040
    %v1112 = vunpack.c.l.b16 %v1041
    %v1113 = vunpack.c.l.b16 %v1042
    %v1114 = vunpack.c.l.b16 %v1043
    %v1115 = vunpack.c.l.b16 %v1044
    %v1116 = vunpack.c.l.b16 %v1045
    %v1117 = vunpack.c.l.b16 %v1046
    %v1118 = vunpack.c.l.b16 %v1047
    %v1119 = vunpack.c.l.b16 %v1048
    %v1120 = vunpack.c.l.b16 %v1049
    %v1121 = vunpack.c.l.b16 %v1050
    %v1122 = vunpack.c.l.b16 %v1051
    %v1123 = vunpack.c.l.b16 %v1052
    %v1124 = vunpack.c.l.b16 %v1053
    %v1125 = vunpack.c.l.b16 %v1054
    %v1126 = vunpack.c.l.b16 %v1055
    %v1127 = vunpack.c.l.b16 %v1056
    %v1128 = vunpack.c.l.b16 %v1057
    %v1129 = vunpack.c.l.b16 %v1058
    %v1130 = vunpack.c.l.b16 %v1059
    %v1131 = vunpack.c.l.b16 %v1060
    %v1132 = vunpack.c.l.b16 %v1061
    %v1133 = vunpack.c.l.b16 %v1062
    %v1134 = vunpack.c.l.b16 %v1063
    %v1135 = vunpack.c.l.b16 %v1064
    %v1136 = vunpack.c.l.b16 %v1065
    %v1137 = vunpack.c.l.b16 %v1066
    %v1138 = vunpack.c.l.b16 %v1067
    %v1139 = vunpack.c.l.b16 %v1068
    %v1140 = vunpack.c.l.b16 %v1069
    %v1141 = vunpack.c.l.b16 %v1070
    %v1142 = vpack.c.b16 %v1111, %v1110
    %v1143 = vpack.c.b16 %v1113, %v1112
    %v1144 = vpack.c.b16 %v1115, %v1114
    %v1145 = vpack.c.b16 %v1117, %v1116
    %v1146 = vpack.c.b16 %v1119, %v1118
    %v1147 = vpack.c.b16 %v1121, %v1120
    %v1148 = vpack.c.b16 %v1123, %v1122
    %v1149 = vpack.c.b16 %v1125, %v1124
    %v1150 = vpack.c.b16 %v1127, %v1126
    %v1151 = vpack.c.b16 %v1129, %v1128
    %v1152 = vpack.c.b16 %v1131, %v1130
    %v1153 = vpack.c.b16 %v1133, %v1132
    %v1154 = vpack.c.b16 %v1135, %v1134
    %v1155 = vpack.c.b16 %v1137, %v1136
    %v1156 = vpack.c.b16 %v1139, %v1138
    %v1157 = vpack.c.b16 %v1141, %v1140
    %1174 = vmatprep.subr.bf16.mxu0 0
    %1175 = vmatpush1.bf16.msra.mxu0 %v1142
    %1176 = vmatprep.subr.bf16.mxu0 0
    %1177 = vmatpush1.bf16.msra.mxu0 %v1143
    %1178 = vmatprep.subr.bf16.mxu0 0
    %1179 = vmatpush1.bf16.msra.mxu0 %v1144
    %1180 = vmatprep.subr.bf16.mxu0 0
    %1181 = vmatpush1.bf16.msra.mxu0 %v1145
    %1182 = vmatprep.subr.bf16.mxu0 0
    %1183 = vmatpush1.bf16.msra.mxu0 %v1146
    %1184 = vmatprep.subr.bf16.mxu0 0
    %1185 = vmatpush1.bf16.msra.mxu0 %v1147
    %1186 = vmatprep.subr.bf16.mxu0 0
    %1187 = vmatpush1.bf16.msra.mxu0 %v1148
    %1188 = vmatprep.subr.bf16.mxu0 0
    %1189 = vmatpush1.bf16.msra.mxu0 %v1149
    %1190 = vmatprep.subr.bf16.mxu0 0
    %1191 = vmatpush1.bf16.msra.mxu0 %v1150
    %1192 = vmatprep.subr.bf16.mxu0 0
    %1193 = vmatpush1.bf16.msra.mxu0 %v1151
    %1194 = vmatprep.subr.bf16.mxu0 0
    %1195 = vmatpush1.bf16.msra.mxu0 %v1152
    %1196 = vmatprep.subr.bf16.mxu0 0
    %1197 = vmatpush1.bf16.msra.mxu0 %v1153
    %1198 = vmatprep.subr.bf16.mxu0 0
    %1199 = vmatpush1.bf16.msra.mxu0 %v1154
    %1200 = vmatprep.subr.bf16.mxu0 0
    %1201 = vmatpush1.bf16.msra.mxu0 %v1155
    %1202 = vmatprep.subr.bf16.mxu0 0
    %1203 = vmatpush1.bf16.msra.mxu0 %v1156
    %1204 = vmatprep.subr.bf16.mxu0 0
    %1205 = vmatpush1.bf16.msra.mxu0 %v1157
    %1206 = vmatprep.mubr.bf16.mxu0 %v1031
    %1207 = vmatmul.mubr.bf16.gmra.mrb[0].mxu0 %v878
    %v1208 = vpop.f32.mrb[0].mxu0
    %v1209 = vadd.f32 %v1076, %v1208
    %v1210 = vpop.f32.mrb[0].mxu0
    %v1211 = vpop.f32.mrb[0].mxu0
    %v1212 = vadd.f32 %v1076, %v1211
    %v1213 = vpop.f32.mrb[0].mxu0
    %1214 = vmatprep.mubr.bf16.mxu0 %v1032
    %1215 = vmatmul.mubr.bf16.gmra.mrb[0].mxu0 %v879
    %v1216 = vpop.f32.mrb[0].mxu0
    %v1217 = vadd.f32 %v1076, %v1216
    %v1218 = vpop.f32.mrb[0].mxu0
    %v1219 = vpop.f32.mrb[0].mxu0
    %v1220 = vadd.f32 %v1076, %v1219
    %v1221 = vpop.f32.mrb[0].mxu0
    %1222 = vmatprep.mubr.bf16.mxu0 %v1033
    %1223 = vmatmul.mubr.bf16.gmra.mrb[0].mxu0 %v880
    %v1224 = vpop.f32.mrb[0].mxu0
    %v1225 = vadd.f32 %v1076, %v1224
    %v1226 = vpop.f32.mrb[0].mxu0
    %v1227 = vpop.f32.mrb[0].mxu0
    %v1228 = vadd.f32 %v1076, %v1227
    %v1229 = vpop.f32.mrb[0].mxu0
    %1230 = vmatprep.mubr.bf16.mxu0 %v1034
    %1231 = vmatmul.mubr.bf16.gmra.mrb[0].mxu0 %v881
    %v1232 = vpop.f32.mrb[0].mxu0
    %v1233 = vadd.f32 %v1076, %v1232
    %v1234 = vpop.f32.mrb[0].mxu0
    %v1235 = vpop.f32.mrb[0].mxu0
    %v1236 = vadd.f32 %v1076, %v1235
    %v1237 = vpop.f32.mrb[0].mxu0
    %1238 = vmatprep.mubr.bf16.mxu0 %v1035
    %1239 = vmatmul.mubr.bf16.gmra.mrb[0].mxu0 %v882
    %v1240 = vpop.f32.mrb[0].mxu0
    %v1241 = vadd.f32 %v1076, %v1240
    %v1242 = vpop.f32.mrb[0].mxu0
    %v1243 = vpop.f32.mrb[0].mxu0
    %v1244 = vadd.f32 %v1076, %v1243
    %v1245 = vpop.f32.mrb[0].mxu0
    %1246 = vmatprep.mubr.bf16.mxu0 %v1036
    %1247 = vmatmul.mubr.bf16.gmra.mrb[0].mxu0 %v883
    %v1248 = vpop.f32.mrb[0].mxu0
    %v1249 = vadd.f32 %v1076, %v1248
    %v1250 = vpop.f32.mrb[0].mxu0
    %v1251 = vpop.f32.mrb[0].mxu0
    %v1252 = vadd.f32 %v1076, %v1251
    %v1253 = vpop.f32.mrb[0].mxu0
    %1254 = vmatprep.mubr.bf16.mxu0 %v1037
    %1255 = vmatmul.mubr.bf16.gmra.mrb[0].mxu0 %v884
    %v1256 = vpop.f32.mrb[0].mxu0
    %v1257 = vadd.f32 %v1076, %v1256
    %v1258 = vpop.f32.mrb[0].mxu0
    %v1259 = vpop.f32.mrb[0].mxu0
    %v1260 = vadd.f32 %v1076, %v1259
    %v1261 = vpop.f32.mrb[0].mxu0
    %1262 = vmatprep.mubr.bf16.mxu0 %v1038
    %1263 = vmatmul.mubr.bf16.gmra.mrb[0].mxu0 %v885
    %v1264 = vpop.f32.mrb[0].mxu0
    %v1265 = vadd.f32 %v1076, %v1264
    %v1266 = vpop.f32.mrb[0].mxu0
    %v1267 = vpop.f32.mrb[0].mxu0
    %v1268 = vadd.f32 %v1076, %v1267
    %v1269 = vpop.f32.mrb[0].mxu0
    %1270 = vdwg.mxu0
    %v1271 = vsel %vm333, %v1209, -inf
    %v1272 = vsel %vm333, %v1212, -inf
    %v1273 = vsel %vm333, %v1217, -inf
    %v1274 = vsel %vm333, %v1220, -inf
    %v1275 = vsel %vm333, %v1225, -inf
    %v1276 = vsel %vm333, %v1228, -inf
    %v1277 = vsel %vm333, %v1233, -inf
    %v1278 = vsel %vm333, %v1236, -inf
    %v1279 = vsel %vm333, %v1241, -inf
    %v1280 = vsel %vm333, %v1244, -inf
    %v1281 = vsel %vm333, %v1249, -inf
    %v1282 = vsel %vm333, %v1252, -inf
    %v1283 = vsel %vm333, %v1257, -inf
    %v1284 = vsel %vm333, %v1260, -inf
    %v1285 = vsel %vm333, %v1265, -inf
    %v1286 = vsel %vm333, %v1268, -inf
    %1287 = vmax.xlane.f32.xlu0 %v1271
    %v1288 = vpop.xlane.xlu0 %1287
    %1289 = vmax.xlane.f32.xlu0 %v1272
    %v1290 = vpop.xlane.xlu0 %1289
    %1291 = vmax.xlane.f32.xlu0 %v1273
    %v1292 = vpop.xlane.xlu0 %1291
    %1293 = vmax.xlane.f32.xlu0 %v1274
    %v1294 = vpop.xlane.xlu0 %1293
    %1295 = vmax.xlane.f32.xlu0 %v1275
    %v1296 = vpop.xlane.xlu0 %1295
    %1297 = vmax.xlane.f32.xlu0 %v1276
    %v1298 = vpop.xlane.xlu0 %1297
    %1299 = vmax.xlane.f32.xlu0 %v1277
    %v1300 = vpop.xlane.xlu0 %1299
    %1301 = vmax.xlane.f32.xlu0 %v1278
    %v1302 = vpop.xlane.xlu0 %1301
    %1303 = vmax.xlane.f32.xlu0 %v1279
    %v1304 = vpop.xlane.xlu0 %1303
    %1305 = vmax.xlane.f32.xlu0 %v1280
    %v1306 = vpop.xlane.xlu0 %1305
    %1307 = vmax.xlane.f32.xlu0 %v1281
    %v1308 = vpop.xlane.xlu0 %1307
    %1309 = vmax.xlane.f32.xlu0 %v1282
    %v1310 = vpop.xlane.xlu0 %1309
    %1311 = vmax.xlane.f32.xlu0 %v1283
    %v1312 = vpop.xlane.xlu0 %1311
    %1313 = vmax.xlane.f32.xlu0 %v1284
    %v1314 = vpop.xlane.xlu0 %1313
    %1315 = vmax.xlane.f32.xlu0 %v1285
    %v1316 = vpop.xlane.xlu0 %1315
    %1317 = vmax.xlane.f32.xlu0 %v1286
    %v1318 = vpop.xlane.xlu0 %1317
    %vm1319 = vcmp.ge.f32.partialorder %v1271, %v1288
    %vm1320 = vcmp.ge.f32.partialorder %v1272, %v1290
    %vm1321 = vcmp.ge.f32.partialorder %v1273, %v1292
    %vm1322 = vcmp.ge.f32.partialorder %v1274, %v1294
    %vm1323 = vcmp.ge.f32.partialorder %v1275, %v1296
    %vm1324 = vcmp.ge.f32.partialorder %v1276, %v1298
    %vm1325 = vcmp.ge.f32.partialorder %v1277, %v1300
    %vm1326 = vcmp.ge.f32.partialorder %v1278, %v1302
    %vm1327 = vcmp.ge.f32.partialorder %v1279, %v1304
    %vm1328 = vcmp.ge.f32.partialorder %v1280, %v1306
    %vm1329 = vcmp.ge.f32.partialorder %v1281, %v1308
    %vm1330 = vcmp.ge.f32.partialorder %v1282, %v1310
    %vm1331 = vcmp.ge.f32.partialorder %v1283, %v1312
    %vm1332 = vcmp.ge.f32.partialorder %v1284, %v1314
    %vm1333 = vcmp.ge.f32.partialorder %v1285, %v1316
    %vm1334 = vcmp.ge.f32.partialorder %v1286, %v1318
    %v1335 = vsel %vm1319, -inf, %v1271
    %v1336 = vsel %vm1320, -inf, %v1272
    %v1337 = vsel %vm1321, -inf, %v1273
    %v1338 = vsel %vm1322, -inf, %v1274
    %v1339 = vsel %vm1323, -inf, %v1275
    %v1340 = vsel %vm1324, -inf, %v1276
    %v1341 = vsel %vm1325, -inf, %v1277
    %v1342 = vsel %vm1326, -inf, %v1278
    %v1343 = vsel %vm1327, -inf, %v1279
    %v1344 = vsel %vm1328, -inf, %v1280
    %v1345 = vsel %vm1329, -inf, %v1281
    %v1346 = vsel %vm1330, -inf, %v1282
    %v1347 = vsel %vm1331, -inf, %v1283
    %v1348 = vsel %vm1332, -inf, %v1284
    %v1349 = vsel %vm1333, -inf, %v1285
    %v1350 = vsel %vm1334, -inf, %v1286
    %1351 = vmax.xlane.f32.xlu0 %v1335
    %v1352 = vpop.xlane.xlu0 %1351
    %1353 = vmax.xlane.f32.xlu0 %v1336
    %v1354 = vpop.xlane.xlu0 %1353
    %1355 = vmax.xlane.f32.xlu0 %v1337
    %v1356 = vpop.xlane.xlu0 %1355
    %1357 = vmax.xlane.f32.xlu0 %v1338
    %v1358 = vpop.xlane.xlu0 %1357
    %1359 = vmax.xlane.f32.xlu0 %v1339
    %v1360 = vpop.xlane.xlu0 %1359
    %1361 = vmax.xlane.f32.xlu0 %v1340
    %v1362 = vpop.xlane.xlu0 %1361
    %1363 = vmax.xlane.f32.xlu0 %v1341
    %v1364 = vpop.xlane.xlu0 %1363
    %1365 = vmax.xlane.f32.xlu0 %v1342
    %v1366 = vpop.xlane.xlu0 %1365
    %1367 = vmax.xlane.f32.xlu0 %v1343
    %v1368 = vpop.xlane.xlu0 %1367
    %1369 = vmax.xlane.f32.xlu0 %v1344
    %v1370 = vpop.xlane.xlu0 %1369
    %1371 = vmax.xlane.f32.xlu0 %v1345
    %v1372 = vpop.xlane.xlu0 %1371
    %1373 = vmax.xlane.f32.xlu0 %v1346
    %v1374 = vpop.xlane.xlu0 %1373
    %1375 = vmax.xlane.f32.xlu0 %v1347
    %v1376 = vpop.xlane.xlu0 %1375
    %1377 = vmax.xlane.f32.xlu0 %v1348
    %v1378 = vpop.xlane.xlu0 %1377
    %1379 = vmax.xlane.f32.xlu0 %v1349
    %v1380 = vpop.xlane.xlu0 %1379
    %1381 = vmax.xlane.f32.xlu0 %v1350
    %v1382 = vpop.xlane.xlu0 %1381
    %vm1383 = vcmp.ge.f32.partialorder %v1335, %v1352
    %vm1384 = vcmp.ge.f32.partialorder %v1336, %v1354
    %vm1385 = vcmp.ge.f32.partialorder %v1337, %v1356
    %vm1386 = vcmp.ge.f32.partialorder %v1338, %v1358
    %vm1387 = vcmp.ge.f32.partialorder %v1339, %v1360
    %vm1388 = vcmp.ge.f32.partialorder %v1340, %v1362
    %vm1389 = vcmp.ge.f32.partialorder %v1341, %v1364
    %vm1390 = vcmp.ge.f32.partialorder %v1342, %v1366
    %vm1391 = vcmp.ge.f32.partialorder %v1343, %v1368
    %vm1392 = vcmp.ge.f32.partialorder %v1344, %v1370
    %vm1393 = vcmp.ge.f32.partialorder %v1345, %v1372
    %vm1394 = vcmp.ge.f32.partialorder %v1346, %v1374
    %vm1395 = vcmp.ge.f32.partialorder %v1347, %v1376
    %vm1396 = vcmp.ge.f32.partialorder %v1348, %v1378
    %vm1397 = vcmp.ge.f32.partialorder %v1349, %v1380
    %vm1398 = vcmp.ge.f32.partialorder %v1350, %v1382
    %v1399 = vsel %vm1383, -inf, %v1335
    %v1400 = vsel %vm1384, -inf, %v1336
    %v1401 = vsel %vm1385, -inf, %v1337
    %v1402 = vsel %vm1386, -inf, %v1338
    %v1403 = vsel %vm1387, -inf, %v1339
    %v1404 = vsel %vm1388, -inf, %v1340
    %v1405 = vsel %vm1389, -inf, %v1341
    %v1406 = vsel %vm1390, -inf, %v1342
    %v1407 = vsel %vm1391, -inf, %v1343
    %v1408 = vsel %vm1392, -inf, %v1344
    %v1409 = vsel %vm1393, -inf, %v1345
    %v1410 = vsel %vm1394, -inf, %v1346
    %v1411 = vsel %vm1395, -inf, %v1347
    %v1412 = vsel %vm1396, -inf, %v1348
    %v1413 = vsel %vm1397, -inf, %v1349
    %v1414 = vsel %vm1398, -inf, %v1350
    %1415 = vmax.xlane.f32.xlu0 %v1399
    %v1416 = vpop.xlane.xlu0 %1415
    %1417 = vmax.xlane.f32.xlu0 %v1400
    %v1418 = vpop.xlane.xlu0 %1417
    %1419 = vmax.xlane.f32.xlu0 %v1401
    %v1420 = vpop.xlane.xlu0 %1419
    %1421 = vmax.xlane.f32.xlu0 %v1402
    %v1422 = vpop.xlane.xlu0 %1421
    %1423 = vmax.xlane.f32.xlu0 %v1403
    %v1424 = vpop.xlane.xlu0 %1423
    %1425 = vmax.xlane.f32.xlu0 %v1404
    %v1426 = vpop.xlane.xlu0 %1425
    %1427 = vmax.xlane.f32.xlu0 %v1405
    %v1428 = vpop.xlane.xlu0 %1427
    %1429 = vmax.xlane.f32.xlu0 %v1406
    %v1430 = vpop.xlane.xlu0 %1429
    %1431 = vmax.xlane.f32.xlu0 %v1407
    %v1432 = vpop.xlane.xlu0 %1431
    %1433 = vmax.xlane.f32.xlu0 %v1408
    %v1434 = vpop.xlane.xlu0 %1433
    %1435 = vmax.xlane.f32.xlu0 %v1409
    %v1436 = vpop.xlane.xlu0 %1435
    %1437 = vmax.xlane.f32.xlu0 %v1410
    %v1438 = vpop.xlane.xlu0 %1437
    %1439 = vmax.xlane.f32.xlu0 %v1411
    %v1440 = vpop.xlane.xlu0 %1439
    %1441 = vmax.xlane.f32.xlu0 %v1412
    %v1442 = vpop.xlane.xlu0 %1441
    %1443 = vmax.xlane.f32.xlu0 %v1413
    %v1444 = vpop.xlane.xlu0 %1443
    %1445 = vmax.xlane.f32.xlu0 %v1414
    %v1446 = vpop.xlane.xlu0 %1445
    %vm1447 = vcmp.ge.f32.partialorder %v1399, %v1416
    %vm1448 = vcmp.ge.f32.partialorder %v1400, %v1418
    %vm1449 = vcmp.ge.f32.partialorder %v1401, %v1420
    %vm1450 = vcmp.ge.f32.partialorder %v1402, %v1422
    %vm1451 = vcmp.ge.f32.partialorder %v1403, %v1424
    %vm1452 = vcmp.ge.f32.partialorder %v1404, %v1426
    %vm1453 = vcmp.ge.f32.partialorder %v1405, %v1428
    %vm1454 = vcmp.ge.f32.partialorder %v1406, %v1430
    %vm1455 = vcmp.ge.f32.partialorder %v1407, %v1432
    %vm1456 = vcmp.ge.f32.partialorder %v1408, %v1434
    %vm1457 = vcmp.ge.f32.partialorder %v1409, %v1436
    %vm1458 = vcmp.ge.f32.partialorder %v1410, %v1438
    %vm1459 = vcmp.ge.f32.partialorder %v1411, %v1440
    %vm1460 = vcmp.ge.f32.partialorder %v1412, %v1442
    %vm1461 = vcmp.ge.f32.partialorder %v1413, %v1444
    %vm1462 = vcmp.ge.f32.partialorder %v1414, %v1446
    %v1463 = vsel %vm1447, -inf, %v1399
    %v1464 = vsel %vm1448, -inf, %v1400
    %v1465 = vsel %vm1449, -inf, %v1401
    %v1466 = vsel %vm1450, -inf, %v1402
    %v1467 = vsel %vm1451, -inf, %v1403
    %v1468 = vsel %vm1452, -inf, %v1404
    %v1469 = vsel %vm1453, -inf, %v1405
    %v1470 = vsel %vm1454, -inf, %v1406
    %v1471 = vsel %vm1455, -inf, %v1407
    %v1472 = vsel %vm1456, -inf, %v1408
    %v1473 = vsel %vm1457, -inf, %v1409
    %v1474 = vsel %vm1458, -inf, %v1410
    %v1475 = vsel %vm1459, -inf, %v1411
    %v1476 = vsel %vm1460, -inf, %v1412
    %v1477 = vsel %vm1461, -inf, %v1413
    %v1478 = vsel %vm1462, -inf, %v1414
    %1479 = vmax.xlane.f32.xlu0 %v1463
    %v1480 = vpop.xlane.xlu0 %1479
    %1481 = vmax.xlane.f32.xlu0 %v1464
    %v1482 = vpop.xlane.xlu0 %1481
    %1483 = vmax.xlane.f32.xlu0 %v1465
    %v1484 = vpop.xlane.xlu0 %1483
    %1485 = vmax.xlane.f32.xlu0 %v1466
    %v1486 = vpop.xlane.xlu0 %1485
    %1487 = vmax.xlane.f32.xlu0 %v1467
    %v1488 = vpop.xlane.xlu0 %1487
    %1489 = vmax.xlane.f32.xlu0 %v1468
    %v1490 = vpop.xlane.xlu0 %1489
    %1491 = vmax.xlane.f32.xlu0 %v1469
    %v1492 = vpop.xlane.xlu0 %1491
    %1493 = vmax.xlane.f32.xlu0 %v1470
    %v1494 = vpop.xlane.xlu0 %1493
    %1495 = vmax.xlane.f32.xlu0 %v1471
    %v1496 = vpop.xlane.xlu0 %1495
    %1497 = vmax.xlane.f32.xlu0 %v1472
    %v1498 = vpop.xlane.xlu0 %1497
    %1499 = vmax.xlane.f32.xlu0 %v1473
    %v1500 = vpop.xlane.xlu0 %1499
    %1501 = vmax.xlane.f32.xlu0 %v1474
    %v1502 = vpop.xlane.xlu0 %1501
    %1503 = vmax.xlane.f32.xlu0 %v1475
    %v1504 = vpop.xlane.xlu0 %1503
    %1505 = vmax.xlane.f32.xlu0 %v1476
    %v1506 = vpop.xlane.xlu0 %1505
    %1507 = vmax.xlane.f32.xlu0 %v1477
    %v1508 = vpop.xlane.xlu0 %1507
    %1509 = vmax.xlane.f32.xlu0 %v1478
    %v1510 = vpop.xlane.xlu0 %1509
    %vm1511 = vcmp.ge.f32.partialorder %v1463, %v1480
    %vm1512 = vcmp.ge.f32.partialorder %v1464, %v1482
    %vm1513 = vcmp.ge.f32.partialorder %v1465, %v1484
    %vm1514 = vcmp.ge.f32.partialorder %v1466, %v1486
    %vm1515 = vcmp.ge.f32.partialorder %v1467, %v1488
    %vm1516 = vcmp.ge.f32.partialorder %v1468, %v1490
    %vm1517 = vcmp.ge.f32.partialorder %v1469, %v1492
    %vm1518 = vcmp.ge.f32.partialorder %v1470, %v1494
    %vm1519 = vcmp.ge.f32.partialorder %v1471, %v1496
    %vm1520 = vcmp.ge.f32.partialorder %v1472, %v1498
    %vm1521 = vcmp.ge.f32.partialorder %v1473, %v1500
    %vm1522 = vcmp.ge.f32.partialorder %v1474, %v1502
    %vm1523 = vcmp.ge.f32.partialorder %v1475, %v1504
    %vm1524 = vcmp.ge.f32.partialorder %v1476, %v1506
    %vm1525 = vcmp.ge.f32.partialorder %v1477, %v1508
    %vm1526 = vcmp.ge.f32.partialorder %v1478, %v1510
    %v1527 = vsel %vm1511, -inf, %v1463
    %v1528 = vsel %vm1512, -inf, %v1464
    %v1529 = vsel %vm1513, -inf, %v1465
    %v1530 = vsel %vm1514, -inf, %v1466
    %v1531 = vsel %vm1515, -inf, %v1467
    %v1532 = vsel %vm1516, -inf, %v1468
    %v1533 = vsel %vm1517, -inf, %v1469
    %v1534 = vsel %vm1518, -inf, %v1470
    %v1535 = vsel %vm1519, -inf, %v1471
    %v1536 = vsel %vm1520, -inf, %v1472
    %v1537 = vsel %vm1521, -inf, %v1473
    %v1538 = vsel %vm1522, -inf, %v1474
    %v1539 = vsel %vm1523, -inf, %v1475
    %v1540 = vsel %vm1524, -inf, %v1476
    %v1541 = vsel %vm1525, -inf, %v1477
    %v1542 = vsel %vm1526, -inf, %v1478
    %1543 = vmax.xlane.f32.xlu0 %v1527
    %v1544 = vpop.xlane.xlu0 %1543
    %1545 = vmax.xlane.f32.xlu0 %v1528
    %v1546 = vpop.xlane.xlu0 %1545
    %1547 = vmax.xlane.f32.xlu0 %v1529
    %v1548 = vpop.xlane.xlu0 %1547
    %1549 = vmax.xlane.f32.xlu0 %v1530
    %v1550 = vpop.xlane.xlu0 %1549
    %1551 = vmax.xlane.f32.xlu0 %v1531
    %v1552 = vpop.xlane.xlu0 %1551
    %1553 = vmax.xlane.f32.xlu0 %v1532
    %v1554 = vpop.xlane.xlu0 %1553
    %1555 = vmax.xlane.f32.xlu0 %v1533
    %v1556 = vpop.xlane.xlu0 %1555
    %1557 = vmax.xlane.f32.xlu0 %v1534
    %v1558 = vpop.xlane.xlu0 %1557
    %1559 = vmax.xlane.f32.xlu0 %v1535
    %v1560 = vpop.xlane.xlu0 %1559
    %1561 = vmax.xlane.f32.xlu0 %v1536
    %v1562 = vpop.xlane.xlu0 %1561
    %1563 = vmax.xlane.f32.xlu0 %v1537
    %v1564 = vpop.xlane.xlu0 %1563
    %1565 = vmax.xlane.f32.xlu0 %v1538
    %v1566 = vpop.xlane.xlu0 %1565
    %1567 = vmax.xlane.f32.xlu0 %v1539
    %v1568 = vpop.xlane.xlu0 %1567
    %1569 = vmax.xlane.f32.xlu0 %v1540
    %v1570 = vpop.xlane.xlu0 %1569
    %1571 = vmax.xlane.f32.xlu0 %v1541
    %v1572 = vpop.xlane.xlu0 %1571
    %1573 = vmax.xlane.f32.xlu0 %v1542
    %v1574 = vpop.xlane.xlu0 %1573
    %vm1575 = vcmp.ge.f32.partialorder %v1527, %v1544
    %vm1576 = vcmp.ge.f32.partialorder %v1528, %v1546
    %vm1577 = vcmp.ge.f32.partialorder %v1529, %v1548
    %vm1578 = vcmp.ge.f32.partialorder %v1530, %v1550
    %vm1579 = vcmp.ge.f32.partialorder %v1531, %v1552
    %vm1580 = vcmp.ge.f32.partialorder %v1532, %v1554
    %vm1581 = vcmp.ge.f32.partialorder %v1533, %v1556
    %vm1582 = vcmp.ge.f32.partialorder %v1534, %v1558
    %vm1583 = vcmp.ge.f32.partialorder %v1535, %v1560
    %vm1584 = vcmp.ge.f32.partialorder %v1536, %v1562
    %vm1585 = vcmp.ge.f32.partialorder %v1537, %v1564
    %vm1586 = vcmp.ge.f32.partialorder %v1538, %v1566
    %vm1587 = vcmp.ge.f32.partialorder %v1539, %v1568
    %vm1588 = vcmp.ge.f32.partialorder %v1540, %v1570
    %vm1589 = vcmp.ge.f32.partialorder %v1541, %v1572
    %vm1590 = vcmp.ge.f32.partialorder %v1542, %v1574
    %v1591 = vsel %vm1575, -inf, %v1527
    %v1592 = vsel %vm1576, -inf, %v1528
    %v1593 = vsel %vm1577, -inf, %v1529
    %v1594 = vsel %vm1578, -inf, %v1530
    %v1595 = vsel %vm1579, -inf, %v1531
    %v1596 = vsel %vm1580, -inf, %v1532
    %v1597 = vsel %vm1581, -inf, %v1533
    %v1598 = vsel %vm1582, -inf, %v1534
    %v1599 = vsel %vm1583, -inf, %v1535
    %v1600 = vsel %vm1584, -inf, %v1536
    %v1601 = vsel %vm1585, -inf, %v1537
    %v1602 = vsel %vm1586, -inf, %v1538
    %v1603 = vsel %vm1587, -inf, %v1539
    %v1604 = vsel %vm1588, -inf, %v1540
    %v1605 = vsel %vm1589, -inf, %v1541
    %v1606 = vsel %vm1590, -inf, %v1542
    %1607 = vmax.xlane.f32.xlu0 %v1591
    %v1608 = vpop.xlane.xlu0 %1607
    %1609 = vmax.xlane.f32.xlu0 %v1592
    %v1610 = vpop.xlane.xlu0 %1609
    %1611 = vmax.xlane.f32.xlu0 %v1593
    %v1612 = vpop.xlane.xlu0 %1611
    %1613 = vmax.xlane.f32.xlu0 %v1594
    %v1614 = vpop.xlane.xlu0 %1613
    %1615 = vmax.xlane.f32.xlu0 %v1595
    %v1616 = vpop.xlane.xlu0 %1615
    %1617 = vmax.xlane.f32.xlu0 %v1596
    %v1618 = vpop.xlane.xlu0 %1617
    %1619 = vmax.xlane.f32.xlu0 %v1597
    %v1620 = vpop.xlane.xlu0 %1619
    %1621 = vmax.xlane.f32.xlu0 %v1598
    %v1622 = vpop.xlane.xlu0 %1621
    %1623 = vmax.xlane.f32.xlu0 %v1599
    %v1624 = vpop.xlane.xlu0 %1623
    %1625 = vmax.xlane.f32.xlu0 %v1600
    %v1626 = vpop.xlane.xlu0 %1625
    %1627 = vmax.xlane.f32.xlu0 %v1601
    %v1628 = vpop.xlane.xlu0 %1627
    %1629 = vmax.xlane.f32.xlu0 %v1602
    %v1630 = vpop.xlane.xlu0 %1629
    %1631 = vmax.xlane.f32.xlu0 %v1603
    %v1632 = vpop.xlane.xlu0 %1631
    %1633 = vmax.xlane.f32.xlu0 %v1604
    %v1634 = vpop.xlane.xlu0 %1633
    %1635 = vmax.xlane.f32.xlu0 %v1605
    %v1636 = vpop.xlane.xlu0 %1635
    %1637 = vmax.xlane.f32.xlu0 %v1606
    %v1638 = vpop.xlane.xlu0 %1637
    %vm1639 = vcmp.ge.f32.partialorder %v1591, %v1608
    %vm1640 = vcmp.ge.f32.partialorder %v1592, %v1610
    %vm1641 = vcmp.ge.f32.partialorder %v1593, %v1612
    %vm1642 = vcmp.ge.f32.partialorder %v1594, %v1614
    %vm1643 = vcmp.ge.f32.partialorder %v1595, %v1616
    %vm1644 = vcmp.ge.f32.partialorder %v1596, %v1618
    %vm1645 = vcmp.ge.f32.partialorder %v1597, %v1620
    %vm1646 = vcmp.ge.f32.partialorder %v1598, %v1622
    %vm1647 = vcmp.ge.f32.partialorder %v1599, %v1624
    %vm1648 = vcmp.ge.f32.partialorder %v1600, %v1626
    %vm1649 = vcmp.ge.f32.partialorder %v1601, %v1628
    %vm1650 = vcmp.ge.f32.partialorder %v1602, %v1630
    %vm1651 = vcmp.ge.f32.partialorder %v1603, %v1632
    %vm1652 = vcmp.ge.f32.partialorder %v1604, %v1634
    %vm1653 = vcmp.ge.f32.partialorder %v1605, %v1636
    %vm1654 = vcmp.ge.f32.partialorder %v1606, %v1638
    %v1655 = vsel %vm1639, -inf, %v1591
    %v1656 = vsel %vm1640, -inf, %v1592
    %v1657 = vsel %vm1641, -inf, %v1593
    %v1658 = vsel %vm1642, -inf, %v1594
    %v1659 = vsel %vm1643, -inf, %v1595
    %v1660 = vsel %vm1644, -inf, %v1596
    %v1661 = vsel %vm1645, -inf, %v1597
    %v1662 = vsel %vm1646, -inf, %v1598
    %v1663 = vsel %vm1647, -inf, %v1599
    %v1664 = vsel %vm1648, -inf, %v1600
    %v1665 = vsel %vm1649, -inf, %v1601
    %v1666 = vsel %vm1650, -inf, %v1602
    %v1667 = vsel %vm1651, -inf, %v1603
    %v1668 = vsel %vm1652, -inf, %v1604
    %v1669 = vsel %vm1653, -inf, %v1605
    %v1670 = vsel %vm1654, -inf, %v1606
    %1671 = vmax.xlane.f32.xlu0 %v1655
    %v1672 = vpop.xlane.xlu0 %1671
    %1673 = vmax.xlane.f32.xlu0 %v1656
    %v1674 = vpop.xlane.xlu0 %1673
    %1675 = vmax.xlane.f32.xlu0 %v1657
    %v1676 = vpop.xlane.xlu0 %1675
    %1677 = vmax.xlane.f32.xlu0 %v1658
    %v1678 = vpop.xlane.xlu0 %1677
    %1679 = vmax.xlane.f32.xlu0 %v1659
    %v1680 = vpop.xlane.xlu0 %1679
    %1681 = vmax.xlane.f32.xlu0 %v1660
    %v1682 = vpop.xlane.xlu0 %1681
    %1683 = vmax.xlane.f32.xlu0 %v1661
    %v1684 = vpop.xlane.xlu0 %1683
    %1685 = vmax.xlane.f32.xlu0 %v1662
    %v1686 = vpop.xlane.xlu0 %1685
    %1687 = vmax.xlane.f32.xlu0 %v1663
    %v1688 = vpop.xlane.xlu0 %1687
    %1689 = vmax.xlane.f32.xlu0 %v1664
    %v1690 = vpop.xlane.xlu0 %1689
    %1691 = vmax.xlane.f32.xlu0 %v1665
    %v1692 = vpop.xlane.xlu0 %1691
    %1693 = vmax.xlane.f32.xlu0 %v1666
    %v1694 = vpop.xlane.xlu0 %1693
    %1695 = vmax.xlane.f32.xlu0 %v1667
    %v1696 = vpop.xlane.xlu0 %1695
    %1697 = vmax.xlane.f32.xlu0 %v1668
    %v1698 = vpop.xlane.xlu0 %1697
    %1699 = vmax.xlane.f32.xlu0 %v1669
    %v1700 = vpop.xlane.xlu0 %1699
    %1701 = vmax.xlane.f32.xlu0 %v1670
    %v1702 = vpop.xlane.xlu0 %1701
    %vm1703 = vcmp.ge.f32.partialorder %v1655, %v1672
    %vm1704 = vcmp.ge.f32.partialorder %v1656, %v1674
    %vm1705 = vcmp.ge.f32.partialorder %v1657, %v1676
    %vm1706 = vcmp.ge.f32.partialorder %v1658, %v1678
    %vm1707 = vcmp.ge.f32.partialorder %v1659, %v1680
    %vm1708 = vcmp.ge.f32.partialorder %v1660, %v1682
    %vm1709 = vcmp.ge.f32.partialorder %v1661, %v1684
    %vm1710 = vcmp.ge.f32.partialorder %v1662, %v1686
    %vm1711 = vcmp.ge.f32.partialorder %v1663, %v1688
    %vm1712 = vcmp.ge.f32.partialorder %v1664, %v1690
    %vm1713 = vcmp.ge.f32.partialorder %v1665, %v1692
    %vm1714 = vcmp.ge.f32.partialorder %v1666, %v1694
    %vm1715 = vcmp.ge.f32.partialorder %v1667, %v1696
    %vm1716 = vcmp.ge.f32.partialorder %v1668, %v1698
    %vm1717 = vcmp.ge.f32.partialorder %v1669, %v1700
    %vm1718 = vcmp.ge.f32.partialorder %v1670, %v1702
    %v1719 = vsel %vm1703, -inf, %v1655
    %v1720 = vsel %vm1704, -inf, %v1656
    %v1721 = vsel %vm1705, -inf, %v1657
    %v1722 = vsel %vm1706, -inf, %v1658
    %v1723 = vsel %vm1707, -inf, %v1659
    %v1724 = vsel %vm1708, -inf, %v1660
    %v1725 = vsel %vm1709, -inf, %v1661
    %v1726 = vsel %vm1710, -inf, %v1662
    %v1727 = vsel %vm1711, -inf, %v1663
    %v1728 = vsel %vm1712, -inf, %v1664
    %v1729 = vsel %vm1713, -inf, %v1665
    %v1730 = vsel %vm1714, -inf, %v1666
    %v1731 = vsel %vm1715, -inf, %v1667
    %v1732 = vsel %vm1716, -inf, %v1668
    %v1733 = vsel %vm1717, -inf, %v1669
    %v1734 = vsel %vm1718, -inf, %v1670
    %1735 = vmax.xlane.f32.xlu0 %v1719
    %v1736 = vpop.xlane.xlu0 %1735
    %1737 = vmax.xlane.f32.xlu0 %v1720
    %v1738 = vpop.xlane.xlu0 %1737
    %1739 = vmax.xlane.f32.xlu0 %v1721
    %v1740 = vpop.xlane.xlu0 %1739
    %1741 = vmax.xlane.f32.xlu0 %v1722
    %v1742 = vpop.xlane.xlu0 %1741
    %1743 = vmax.xlane.f32.xlu0 %v1723
    %v1744 = vpop.xlane.xlu0 %1743
    %1745 = vmax.xlane.f32.xlu0 %v1724
    %v1746 = vpop.xlane.xlu0 %1745
    %1747 = vmax.xlane.f32.xlu0 %v1725
    %v1748 = vpop.xlane.xlu0 %1747
    %1749 = vmax.xlane.f32.xlu0 %v1726
    %v1750 = vpop.xlane.xlu0 %1749
    %1751 = vmax.xlane.f32.xlu0 %v1727
    %v1752 = vpop.xlane.xlu0 %1751
    %1753 = vmax.xlane.f32.xlu0 %v1728
    %v1754 = vpop.xlane.xlu0 %1753
    %1755 = vmax.xlane.f32.xlu0 %v1729
    %v1756 = vpop.xlane.xlu0 %1755
    %1757 = vmax.xlane.f32.xlu0 %v1730
    %v1758 = vpop.xlane.xlu0 %1757
    %1759 = vmax.xlane.f32.xlu0 %v1731
    %v1760 = vpop.xlane.xlu0 %1759
    %1761 = vmax.xlane.f32.xlu0 %v1732
    %v1762 = vpop.xlane.xlu0 %1761
    %1763 = vmax.xlane.f32.xlu0 %v1733
    %v1764 = vpop.xlane.xlu0 %1763
    %1765 = vmax.xlane.f32.xlu0 %v1734
    %v1766 = vpop.xlane.xlu0 %1765
    %vm1767 = vcmp.ge.f32.partialorder %v1209, %v1736
    %vm1768 = vcmp.ge.f32.partialorder %v1212, %v1738
    %vm1769 = vcmp.ge.f32.partialorder %v1217, %v1740
    %vm1770 = vcmp.ge.f32.partialorder %v1220, %v1742
    %vm1771 = vcmp.ge.f32.partialorder %v1225, %v1744
    %vm1772 = vcmp.ge.f32.partialorder %v1228, %v1746
    %vm1773 = vcmp.ge.f32.partialorder %v1233, %v1748
    %vm1774 = vcmp.ge.f32.partialorder %v1236, %v1750
    %vm1775 = vcmp.ge.f32.partialorder %v1241, %v1752
    %vm1776 = vcmp.ge.f32.partialorder %v1244, %v1754
    %vm1777 = vcmp.ge.f32.partialorder %v1249, %v1756
    %vm1778 = vcmp.ge.f32.partialorder %v1252, %v1758
    %vm1779 = vcmp.ge.f32.partialorder %v1257, %v1760
    %vm1780 = vcmp.ge.f32.partialorder %v1260, %v1762
    %vm1781 = vcmp.ge.f32.partialorder %v1265, %v1764
    %vm1782 = vcmp.ge.f32.partialorder %v1268, %v1766
    %v1783 = vsel %vm1767, %v1209, 0.0
    %v1784 = vsel %vm1768, %v1212, 0.0
    %v1785 = vsel %vm1769, %v1217, 0.0
    %v1786 = vsel %vm1770, %v1220, 0.0
    %v1787 = vsel %vm1771, %v1225, 0.0
    %v1788 = vsel %vm1772, %v1228, 0.0
    %v1789 = vsel %vm1773, %v1233, 0.0
    %v1790 = vsel %vm1774, %v1236, 0.0
    %v1791 = vsel %vm1775, %v1241, 0.0
    %v1792 = vsel %vm1776, %v1244, 0.0
    %v1793 = vsel %vm1777, %v1249, 0.0
    %v1794 = vsel %vm1778, %v1252, 0.0
    %v1795 = vsel %vm1779, %v1257, 0.0
    %v1796 = vsel %vm1780, %v1260, 0.0
    %v1797 = vsel %vm1781, %v1265, 0.0
    %v1798 = vsel %vm1782, %v1268, 0.0
    %v1799 = vpack.c.bf16 %v1784, %v1783
    %v1800 = vpack.c.bf16 %v1786, %v1785
    %v1801 = vpack.c.bf16 %v1788, %v1787
    %v1802 = vpack.c.bf16 %v1790, %v1789
    %v1803 = vpack.c.bf16 %v1792, %v1791
    %v1804 = vpack.c.bf16 %v1794, %v1793
    %v1805 = vpack.c.bf16 %v1796, %v1795
    %v1806 = vpack.c.bf16 %v1798, %v1797
    %1807 = vmatprep.subr.bf16.mxu0 0
    %1808 = vmatpush1.bf16.msra.mxu0 %v1799
    %1809 = vmatprep.subr.bf16.mxu0 0
    %1810 = vmatpush1.bf16.msra.mxu0 %v1800
    %1811 = vmatprep.subr.bf16.mxu0 0
    %1812 = vmatpush1.bf16.msra.mxu0 %v1801
    %1813 = vmatprep.subr.bf16.mxu0 0
    %1814 = vmatpush1.bf16.msra.mxu0 %v1802
    %1815 = vmatprep.subr.bf16.mxu0 0
    %1816 = vmatpush1.bf16.msra.mxu0 %v1803
    %1817 = vmatprep.subr.bf16.mxu0 0
    %1818 = vmatpush1.bf16.msra.mxu0 %v1804
    %1819 = vmatprep.subr.bf16.mxu0 0
    %1820 = vmatpush1.bf16.msra.mxu0 %v1805
    %1821 = vmatprep.subr.bf16.mxu0 0
    %1822 = vmatpush1.bf16.msra.mxu0 %v1806
    %1823 = vmatprep.subr.bf16.mxu0 0
    %1824 = vmatpush1.bf16.msra.mxu0 0
    %1825 = vmatprep.subr.bf16.mxu0 0
    %1826 = vmatpush1.bf16.msra.mxu0 0
    %1827 = vmatprep.subr.bf16.mxu0 0
    %1828 = vmatpush1.bf16.msra.mxu0 0
    %1829 = vmatprep.subr.bf16.mxu0 0
    %1830 = vmatpush1.bf16.msra.mxu0 0
    %1831 = vmatprep.subr.bf16.mxu0 0
    %1832 = vmatpush1.bf16.msra.mxu0 0
    %1833 = vmatprep.subr.bf16.mxu0 0
    %1834 = vmatpush1.bf16.msra.mxu0 0
    %1835 = vmatprep.subr.bf16.mxu0 0
    %1836 = vmatpush1.bf16.msra.mxu0 0
    %1837 = vmatprep.subr.bf16.mxu0 0
    %1838 = vmatpush1.bf16.msra.mxu0 0
    %1839 = vmatprep.mubr.bf16.mxu0 0
    %1840 = vmatmul.mubr.bf16.gmra.mrb[0].mxu0 %v918
    %v1841 = vpop.f32.mrb[0].mxu0
    %v1842 = vadd.f32 0.0, %v1841
    %v1843 = vpop.f32.mrb[0].mxu0
    %v1844 = vpop.f32.mrb[0].mxu0
    %v1845 = vadd.f32 0.0, %v1844
    %v1846 = vpop.f32.mrb[0].mxu0
    %1847 = vmatprep.mubr.bf16.mxu0 0
    %1848 = vmatmul.mubr.bf16.gmra.mrb[0].mxu0 %v919
    %v1849 = vpop.f32.mrb[0].mxu0
    %v1850 = vadd.f32 0.0, %v1849
    %v1851 = vpop.f32.mrb[0].mxu0
    %v1852 = vpop.f32.mrb[0].mxu0
    %v1853 = vadd.f32 0.0, %v1852
    %v1854 = vpop.f32.mrb[0].mxu0
    %1855 = vmatprep.mubr.bf16.mxu0 0
    %1856 = vmatmul.mubr.bf16.gmra.mrb[0].mxu0 %v920
    %v1857 = vpop.f32.mrb[0].mxu0
    %v1858 = vadd.f32 0.0, %v1857
    %v1859 = vpop.f32.mrb[0].mxu0
    %v1860 = vpop.f32.mrb[0].mxu0
    %v1861 = vadd.f32 0.0, %v1860
    %v1862 = vpop.f32.mrb[0].mxu0
    %1863 = vmatprep.mubr.bf16.mxu0 0
    %1864 = vmatmul.mubr.bf16.gmra.mrb[0].mxu0 %v921
    %v1865 = vpop.f32.mrb[0].mxu0
    %v1866 = vadd.f32 0.0, %v1865
    %v1867 = vpop.f32.mrb[0].mxu0
    %v1868 = vpop.f32.mrb[0].mxu0
    %v1869 = vadd.f32 0.0, %v1868
    %v1870 = vpop.f32.mrb[0].mxu0
    %1871 = vmatprep.mubr.bf16.mxu0 0
    %1872 = vmatmul.mubr.bf16.gmra.mrb[0].mxu0 %v922
    %v1873 = vpop.f32.mrb[0].mxu0
    %v1874 = vadd.f32 0.0, %v1873
    %v1875 = vpop.f32.mrb[0].mxu0
    %v1876 = vpop.f32.mrb[0].mxu0
    %v1877 = vadd.f32 0.0, %v1876
    %v1878 = vpop.f32.mrb[0].mxu0
    %1879 = vmatprep.mubr.bf16.mxu0 0
    %1880 = vmatmul.mubr.bf16.gmra.mrb[0].mxu0 %v923
    %v1881 = vpop.f32.mrb[0].mxu0
    %v1882 = vadd.f32 0.0, %v1881
    %v1883 = vpop.f32.mrb[0].mxu0
    %v1884 = vpop.f32.mrb[0].mxu0
    %v1885 = vadd.f32 0.0, %v1884
    %v1886 = vpop.f32.mrb[0].mxu0
    %1887 = vmatprep.mubr.bf16.mxu0 0
    %1888 = vmatmul.mubr.bf16.gmra.mrb[0].mxu0 %v924
    %v1889 = vpop.f32.mrb[0].mxu0
    %v1890 = vadd.f32 0.0, %v1889
    %v1891 = vpop.f32.mrb[0].mxu0
    %v1892 = vpop.f32.mrb[0].mxu0
    %v1893 = vadd.f32 0.0, %v1892
    %v1894 = vpop.f32.mrb[0].mxu0
    %1895 = vmatprep.mubr.bf16.mxu0 0
    %1896 = vmatmul.mubr.bf16.gmra.mrb[0].mxu0 %v925
    %v1897 = vpop.f32.mrb[0].mxu0
    %v1898 = vadd.f32 0.0, %v1897
    %v1899 = vpop.f32.mrb[0].mxu0
    %v1900 = vpop.f32.mrb[0].mxu0
    %v1901 = vadd.f32 0.0, %v1900
    %v1902 = vpop.f32.mrb[0].mxu0
    %1903 = vdwg.mxu0
    %v1904 = vpack.c.bf16 %v1845, %v1842
    %v1905 = vpack.c.bf16 %v1853, %v1850
    %v1906 = vpack.c.bf16 %v1861, %v1858
    %v1907 = vpack.c.bf16 %v1869, %v1866
    %v1908 = vpack.c.bf16 %v1877, %v1874
    %v1909 = vpack.c.bf16 %v1885, %v1882
    %v1910 = vpack.c.bf16 %v1893, %v1890
    %v1911 = vpack.c.bf16 %v1901, %v1898
    %s1912 = scalar_lea.vmem [#allocation8], 128
    %v1913 = vld [vmem:[%s1912] sm:$0xf]
    %v1914 = vld [vmem:[%s1912 + $0x4] sm:$0xf]
    %v1915 = vld [vmem:[%s1912 + $0x8] sm:$0xf]
    %v1916 = vld [vmem:[%s1912 + $0xc] sm:$0xf]
    %v1917 = vld [vmem:[%s1912 + $0x10] sm:$0xf]
    %v1918 = vld [vmem:[%s1912 + $0x14] sm:$0xf]
    %v1919 = vld [vmem:[%s1912 + $0x18] sm:$0xf]
    %v1920 = vld [vmem:[%s1912 + $0x1c] sm:$0xf]
    %v1921 = vld [vmem:[%s1912 + $0x20] sm:$0xf]
    %v1922 = vld [vmem:[%s1912 + $0x24] sm:$0xf]
    %v1923 = vld [vmem:[%s1912 + $0x28] sm:$0xf]
    %v1924 = vld [vmem:[%s1912 + $0x2c] sm:$0xf]
    %v1925 = vld [vmem:[%s1912 + $0x30] sm:$0xf]
    %v1926 = vld [vmem:[%s1912 + $0x34] sm:$0xf]
    %v1927 = vld [vmem:[%s1912 + $0x38] sm:$0xf]
    %v1928 = vld [vmem:[%s1912 + $0x3c] sm:$0xf]
    %v1929 = vld [vmem:[%s1912 + $0x40] sm:$0xf]
    %v1930 = vld [vmem:[%s1912 + $0x44] sm:$0xf]
    %v1931 = vld [vmem:[%s1912 + $0x48] sm:$0xf]
    %v1932 = vld [vmem:[%s1912 + $0x4c] sm:$0xf]
    %v1933 = vld [vmem:[%s1912 + $0x50] sm:$0xf]
    %v1934 = vld [vmem:[%s1912 + $0x54] sm:$0xf]
    %v1935 = vld [vmem:[%s1912 + $0x58] sm:$0xf]
    %v1936 = vld [vmem:[%s1912 + $0x5c] sm:$0xf]
    %v1937 = vld [vmem:[%s1912 + $0x60] sm:$0xf]
    %v1938 = vld [vmem:[%s1912 + $0x64] sm:$0xf]
    %v1939 = vld [vmem:[%s1912 + $0x68] sm:$0xf]
    %v1940 = vld [vmem:[%s1912 + $0x6c] sm:$0xf]
    %v1941 = vld [vmem:[%s1912 + $0x70] sm:$0xf]
    %v1942 = vld [vmem:[%s1912 + $0x74] sm:$0xf]
    %v1943 = vld [vmem:[%s1912 + $0x78] sm:$0xf]
    %v1944 = vld [vmem:[%s1912 + $0x7c] sm:$0xf]
    %s1945 = scalar_lea.vmem %s5, 1
    %v1946 = vld [vmem:[%s1945] sm:$0x1]
    %v1948 = vlaneseq
    %v1949 = vshrl.u32 %v1948, 7
    %v1950 = vsub.s32 0, %v1949
    %v1951 = vrot.slane %v1946, %v1950
    %v1985 = vunpack.c.l.b16 %v1913
    %v1986 = vunpack.c.l.b16 %v1914
    %v1987 = vunpack.c.l.b16 %v1915
    %v1988 = vunpack.c.l.b16 %v1916
    %v1989 = vunpack.c.l.b16 %v1917
    %v1990 = vunpack.c.l.b16 %v1918
    %v1991 = vunpack.c.l.b16 %v1919
    %v1992 = vunpack.c.l.b16 %v1920
    %v1993 = vunpack.c.l.b16 %v1921
    %v1994 = vunpack.c.l.b16 %v1922
    %v1995 = vunpack.c.l.b16 %v1923
    %v1996 = vunpack.c.l.b16 %v1924
    %v1997 = vunpack.c.l.b16 %v1925
    %v1998 = vunpack.c.l.b16 %v1926
    %v1999 = vunpack.c.l.b16 %v1927
    %v2000 = vunpack.c.l.b16 %v1928
    %v2001 = vunpack.c.l.b16 %v1929
    %v2002 = vunpack.c.l.b16 %v1930
    %v2003 = vunpack.c.l.b16 %v1931
    %v2004 = vunpack.c.l.b16 %v1932
    %v2005 = vunpack.c.l.b16 %v1933
    %v2006 = vunpack.c.l.b16 %v1934
    %v2007 = vunpack.c.l.b16 %v1935
    %v2008 = vunpack.c.l.b16 %v1936
    %v2009 = vunpack.c.l.b16 %v1937
    %v2010 = vunpack.c.l.b16 %v1938
    %v2011 = vunpack.c.l.b16 %v1939
    %v2012 = vunpack.c.l.b16 %v1940
    %v2013 = vunpack.c.l.b16 %v1941
    %v2014 = vunpack.c.l.b16 %v1942
    %v2015 = vunpack.c.l.b16 %v1943
    %v2016 = vunpack.c.l.b16 %v1944
    %v2017 = vpack.c.b16 %v1986, %v1985
    %v2018 = vpack.c.b16 %v1988, %v1987
    %v2019 = vpack.c.b16 %v1990, %v1989
    %v2020 = vpack.c.b16 %v1992, %v1991
    %v2021 = vpack.c.b16 %v1994, %v1993
    %v2022 = vpack.c.b16 %v1996, %v1995
    %v2023 = vpack.c.b16 %v1998, %v1997
    %v2024 = vpack.c.b16 %v2000, %v1999
    %v2025 = vpack.c.b16 %v2002, %v2001
    %v2026 = vpack.c.b16 %v2004, %v2003
    %v2027 = vpack.c.b16 %v2006, %v2005
    %v2028 = vpack.c.b16 %v2008, %v2007
    %v2029 = vpack.c.b16 %v2010, %v2009
    %v2030 = vpack.c.b16 %v2012, %v2011
    %v2031 = vpack.c.b16 %v2014, %v2013
    %v2032 = vpack.c.b16 %v2016, %v2015
    %2049 = vmatprep.subr.bf16.mxu0 0
    %2050 = vmatpush1.bf16.msra.mxu0 %v2017
    %2051 = vmatprep.subr.bf16.mxu0 0
    %2052 = vmatpush1.bf16.msra.mxu0 %v2018
    %2053 = vmatprep.subr.bf16.mxu0 0
    %2054 = vmatpush1.bf16.msra.mxu0 %v2019
    %2055 = vmatprep.subr.bf16.mxu0 0
    %2056 = vmatpush1.bf16.msra.mxu0 %v2020
    %2057 = vmatprep.subr.bf16.mxu0 0
    %2058 = vmatpush1.bf16.msra.mxu0 %v2021
    %2059 = vmatprep.subr.bf16.mxu0 0
    %2060 = vmatpush1.bf16.msra.mxu0 %v2022
    %2061 = vmatprep.subr.bf16.mxu0 0
    %2062 = vmatpush1.bf16.msra.mxu0 %v2023
    %2063 = vmatprep.subr.bf16.mxu0 0
    %2064 = vmatpush1.bf16.msra.mxu0 %v2024
    %2065 = vmatprep.subr.bf16.mxu0 0
    %2066 = vmatpush1.bf16.msra.mxu0 %v2025
    %2067 = vmatprep.subr.bf16.mxu0 0
    %2068 = vmatpush1.bf16.msra.mxu0 %v2026
    %2069 = vmatprep.subr.bf16.mxu0 0
    %2070 = vmatpush1.bf16.msra.mxu0 %v2027
    %2071 = vmatprep.subr.bf16.mxu0 0
    %2072 = vmatpush1.bf16.msra.mxu0 %v2028
    %2073 = vmatprep.subr.bf16.mxu0 0
    %2074 = vmatpush1.bf16.msra.mxu0 %v2029
    %2075 = vmatprep.subr.bf16.mxu0 0
    %2076 = vmatpush1.bf16.msra.mxu0 %v2030
    %2077 = vmatprep.subr.bf16.mxu0 0
    %2078 = vmatpush1.bf16.msra.mxu0 %v2031
    %2079 = vmatprep.subr.bf16.mxu0 0
    %2080 = vmatpush1.bf16.msra.mxu0 %v2032
    %2081 = vmatprep.mubr.bf16.mxu0 %v1904
    %2082 = vmatmul.mubr.bf16.gmra.mrb[0].mxu0 %v1799
    %v2083 = vpop.f32.mrb[0].mxu0
    %v2084 = vadd.f32 %v1951, %v2083
    %v2085 = vpop.f32.mrb[0].mxu0
    %v2086 = vpop.f32.mrb[0].mxu0
    %v2087 = vadd.f32 %v1951, %v2086
    %v2088 = vpop.f32.mrb[0].mxu0
    %2089 = vmatprep.mubr.bf16.mxu0 %v1905
    %2090 = vmatmul.mubr.bf16.gmra.mrb[0].mxu0 %v1800
    %v2091 = vpop.f32.mrb[0].mxu0
    %v2092 = vadd.f32 %v1951, %v2091
    %v2093 = vpop.f32.mrb[0].mxu0
    %v2094 = vpop.f32.mrb[0].mxu0
    %v2095 = vadd.f32 %v1951, %v2094
    %v2096 = vpop.f32.mrb[0].mxu0
    %2097 = vmatprep.mubr.bf16.mxu0 %v1906
    %2098 = vmatmul.mubr.bf16.gmra.mrb[0].mxu0 %v1801
    %v2099 = vpop.f32.mrb[0].mxu0
    %v2100 = vadd.f32 %v1951, %v2099
    %v2101 = vpop.f32.mrb[0].mxu0
    %v2102 = vpop.f32.mrb[0].mxu0
    %v2103 = vadd.f32 %v1951, %v2102
    %v2104 = vpop.f32.mrb[0].mxu0
    %2105 = vmatprep.mubr.bf16.mxu0 %v1907
    %2106 = vmatmul.mubr.bf16.gmra.mrb[0].mxu0 %v1802
    %v2107 = vpop.f32.mrb[0].mxu0
    %v2108 = vadd.f32 %v1951, %v2107
    %v2109 = vpop.f32.mrb[0].mxu0
    %v2110 = vpop.f32.mrb[0].mxu0
    %v2111 = vadd.f32 %v1951, %v2110
    %v2112 = vpop.f32.mrb[0].mxu0
    %2113 = vmatprep.mubr.bf16.mxu0 %v1908
    %2114 = vmatmul.mubr.bf16.gmra.mrb[0].mxu0 %v1803
    %v2115 = vpop.f32.mrb[0].mxu0
    %v2116 = vadd.f32 %v1951, %v2115
    %v2117 = vpop.f32.mrb[0].mxu0
    %v2118 = vpop.f32.mrb[0].mxu0
    %v2119 = vadd.f32 %v1951, %v2118
    %v2120 = vpop.f32.mrb[0].mxu0
    %2121 = vmatprep.mubr.bf16.mxu0 %v1909
    %2122 = vmatmul.mubr.bf16.gmra.mrb[0].mxu0 %v1804
    %v2123 = vpop.f32.mrb[0].mxu0
    %v2124 = vadd.f32 %v1951, %v2123
    %v2125 = vpop.f32.mrb[0].mxu0
    %v2126 = vpop.f32.mrb[0].mxu0
    %v2127 = vadd.f32 %v1951, %v2126
    %v2128 = vpop.f32.mrb[0].mxu0
    %2129 = vmatprep.mubr.bf16.mxu0 %v1910
    %2130 = vmatmul.mubr.bf16.gmra.mrb[0].mxu0 %v1805
    %v2131 = vpop.f32.mrb[0].mxu0
    %v2132 = vadd.f32 %v1951, %v2131
    %v2133 = vpop.f32.mrb[0].mxu0
    %v2134 = vpop.f32.mrb[0].mxu0
    %v2135 = vadd.f32 %v1951, %v2134
    %v2136 = vpop.f32.mrb[0].mxu0
    %2137 = vmatprep.mubr.bf16.mxu0 %v1911
    %2138 = vmatmul.mubr.bf16.gmra.mrb[0].mxu0 %v1806
    %v2139 = vpop.f32.mrb[0].mxu0
    %v2140 = vadd.f32 %v1951, %v2139
    %v2141 = vpop.f32.mrb[0].mxu0
    %v2142 = vpop.f32.mrb[0].mxu0
    %v2143 = vadd.f32 %v1951, %v2142
    %v2144 = vpop.f32.mrb[0].mxu0
    %2145 = vdwg.mxu0
    %v2146 = vpack.c.bf16 %v2087, %v2084
    %v2147 = vpack.c.bf16 %v2095, %v2092
    %v2148 = vpack.c.bf16 %v2103, %v2100
    %v2149 = vpack.c.bf16 %v2111, %v2108
    %v2150 = vpack.c.bf16 %v2119, %v2116
    %v2151 = vpack.c.bf16 %v2127, %v2124
    %v2152 = vpack.c.bf16 %v2135, %v2132
    %v2153 = vpack.c.bf16 %v2143, %v2140
    %v2154 = vld [vmem:[#allocation10] sm:$0xf]
    %v2155 = vld [vmem:[#allocation10 + $0x4] sm:$0xf]
    %v2156 = vld [vmem:[#allocation10 + $0x8] sm:$0xf]
    %v2157 = vld [vmem:[#allocation10 + $0xc] sm:$0xf]
    %v2158 = vld [vmem:[#allocation10 + $0x10] sm:$0xf]
    %v2159 = vld [vmem:[#allocation10 + $0x14] sm:$0xf]
    %v2160 = vld [vmem:[#allocation10 + $0x18] sm:$0xf]
    %v2161 = vld [vmem:[#allocation10 + $0x1c] sm:$0xf]
    %v2162 = vld [vmem:[#allocation10 + $0x20] sm:$0xf]
    %v2163 = vld [vmem:[#allocation10 + $0x24] sm:$0xf]
    %v2164 = vld [vmem:[#allocation10 + $0x28] sm:$0xf]
    %v2165 = vld [vmem:[#allocation10 + $0x2c] sm:$0xf]
    %v2166 = vld [vmem:[#allocation10 + $0x30] sm:$0xf]
    %v2167 = vld [vmem:[#allocation10 + $0x34] sm:$0xf]
    %v2168 = vld [vmem:[#allocation10 + $0x38] sm:$0xf]
    %v2169 = vld [vmem:[#allocation10 + $0x3c] sm:$0xf]
    %v2170 = vld [vmem:[%s7] sm:$0x1]
    %v2172 = vlaneseq
    %v2173 = vshrl.u32 %v2172, 7
    %v2174 = vsub.s32 0, %v2173
    %v2175 = vrot.slane %v2170, %v2174
    %v2193 = vunpack.c.l.b16 %v2154
    %v2194 = vunpack.c.l.b16 %v2155
    %v2195 = vunpack.c.l.b16 %v2156
    %v2196 = vunpack.c.l.b16 %v2157
    %v2197 = vunpack.c.l.b16 %v2158
    %v2198 = vunpack.c.l.b16 %v2159
    %v2199 = vunpack.c.l.b16 %v2160
    %v2200 = vunpack.c.l.b16 %v2161
    %v2201 = vunpack.c.l.b16 %v2162
    %v2202 = vunpack.c.l.b16 %v2163
    %v2203 = vunpack.c.l.b16 %v2164
    %v2204 = vunpack.c.l.b16 %v2165
    %v2205 = vunpack.c.l.b16 %v2166
    %v2206 = vunpack.c.l.b16 %v2167
    %v2207 = vunpack.c.l.b16 %v2168
    %v2208 = vunpack.c.l.b16 %v2169
    %v2209 = vpack.c.b16 %v2194, %v2193
    %v2210 = vpack.c.b16 %v2196, %v2195
    %v2211 = vpack.c.b16 %v2198, %v2197
    %v2212 = vpack.c.b16 %v2200, %v2199
    %v2213 = vpack.c.b16 %v2202, %v2201
    %v2214 = vpack.c.b16 %v2204, %v2203
    %v2215 = vpack.c.b16 %v2206, %v2205
    %v2216 = vpack.c.b16 %v2208, %v2207
    %2225 = vmatprep.subr.bf16.mxu0 0
    %2226 = vmatpush1.bf16.msra.mxu0 %v2209
    %2227 = vmatprep.subr.bf16.mxu0 0
    %2228 = vmatpush1.bf16.msra.mxu0 %v2210
    %2229 = vmatprep.subr.bf16.mxu0 0
    %2230 = vmatpush1.bf16.msra.mxu0 %v2211
    %2231 = vmatprep.subr.bf16.mxu0 0
    %2232 = vmatpush1.bf16.msra.mxu0 %v2212
    %2233 = vmatprep.subr.bf16.mxu0 0
    %2234 = vmatpush1.bf16.msra.mxu0 %v2213
    %2235 = vmatprep.subr.bf16.mxu0 0
    %2236 = vmatpush1.bf16.msra.mxu0 %v2214
    %2237 = vmatprep.subr.bf16.mxu0 0
    %2238 = vmatpush1.bf16.msra.mxu0 %v2215
    %2239 = vmatprep.subr.bf16.mxu0 0
    %2240 = vmatpush1.bf16.msra.mxu0 %v2216
    %2241 = vmatprep.subr.bf16.mxu0 0
    %2242 = vmatpush1.bf16.msra.mxu0 0
    %2243 = vmatprep.subr.bf16.mxu0 0
    %2244 = vmatpush1.bf16.msra.mxu0 0
    %2245 = vmatprep.subr.bf16.mxu0 0
    %2246 = vmatpush1.bf16.msra.mxu0 0
    %2247 = vmatprep.subr.bf16.mxu0 0
    %2248 = vmatpush1.bf16.msra.mxu0 0
    %2249 = vmatprep.subr.bf16.mxu0 0
    %2250 = vmatpush1.bf16.msra.mxu0 0
    %2251 = vmatprep.subr.bf16.mxu0 0
    %2252 = vmatpush1.bf16.msra.mxu0 0
    %2253 = vmatprep.subr.bf16.mxu0 0
    %2254 = vmatpush1.bf16.msra.mxu0 0
    %2255 = vmatprep.subr.bf16.mxu0 0
    %2256 = vmatpush1.bf16.msra.mxu0 0
    %2257 = vmatprep.mubr.bf16.mxu0 0
    %2258 = vmatmul.mubr.bf16.gmra.mrb[0].mxu0 %v2146
    %v2259 = vpop.f32.mrb[0].mxu0
    %v2260 = vadd.f32 %v2175, %v2259
    %v2261 = vpop.f32.mrb[0].mxu0
    %v2262 = vpop.f32.mrb[0].mxu0
    %v2263 = vadd.f32 %v2175, %v2262
    %v2264 = vpop.f32.mrb[0].mxu0
    %2265 = vmatprep.mubr.bf16.mxu0 0
    %2266 = vmatmul.mubr.bf16.gmra.mrb[0].mxu0 %v2147
    %v2267 = vpop.f32.mrb[0].mxu0
    %v2268 = vadd.f32 %v2175, %v2267
    %v2269 = vpop.f32.mrb[0].mxu0
    %v2270 = vpop.f32.mrb[0].mxu0
    %v2271 = vadd.f32 %v2175, %v2270
    %v2272 = vpop.f32.mrb[0].mxu0
    %2273 = vmatprep.mubr.bf16.mxu0 0
    %2274 = vmatmul.mubr.bf16.gmra.mrb[0].mxu0 %v2148
    %v2275 = vpop.f32.mrb[0].mxu0
    %v2276 = vadd.f32 %v2175, %v2275
    %v2277 = vpop.f32.mrb[0].mxu0
    %v2278 = vpop.f32.mrb[0].mxu0
    %v2279 = vadd.f32 %v2175, %v2278
    %v2280 = vpop.f32.mrb[0].mxu0
    %2281 = vmatprep.mubr.bf16.mxu0 0
    %2282 = vmatmul.mubr.bf16.gmra.mrb[0].mxu0 %v2149
    %v2283 = vpop.f32.mrb[0].mxu0
    %v2284 = vadd.f32 %v2175, %v2283
    %v2285 = vpop.f32.mrb[0].mxu0
    %v2286 = vpop.f32.mrb[0].mxu0
    %v2287 = vadd.f32 %v2175, %v2286
    %v2288 = vpop.f32.mrb[0].mxu0
    %2289 = vmatprep.mubr.bf16.mxu0 0
    %2290 = vmatmul.mubr.bf16.gmra.mrb[0].mxu0 %v2150
    %v2291 = vpop.f32.mrb[0].mxu0
    %v2292 = vadd.f32 %v2175, %v2291
    %v2293 = vpop.f32.mrb[0].mxu0
    %v2294 = vpop.f32.mrb[0].mxu0
    %v2295 = vadd.f32 %v2175, %v2294
    %v2296 = vpop.f32.mrb[0].mxu0
    %2297 = vmatprep.mubr.bf16.mxu0 0
    %2298 = vmatmul.mubr.bf16.gmra.mrb[0].mxu0 %v2151
    %v2299 = vpop.f32.mrb[0].mxu0
    %v2300 = vadd.f32 %v2175, %v2299
    %v2301 = vpop.f32.mrb[0].mxu0
    %v2302 = vpop.f32.mrb[0].mxu0
    %v2303 = vadd.f32 %v2175, %v2302
    %v2304 = vpop.f32.mrb[0].mxu0
    %2305 = vmatprep.mubr.bf16.mxu0 0
    %2306 = vmatmul.mubr.bf16.gmra.mrb[0].mxu0 %v2152
    %v2307 = vpop.f32.mrb[0].mxu0
    %v2308 = vadd.f32 %v2175, %v2307
    %v2309 = vpop.f32.mrb[0].mxu0
    %v2310 = vpop.f32.mrb[0].mxu0
    %v2311 = vadd.f32 %v2175, %v2310
    %v2312 = vpop.f32.mrb[0].mxu0
    %2313 = vmatprep.mubr.bf16.mxu0 0
    %2314 = vmatmul.mubr.bf16.gmra.mrb[0].mxu0 %v2153
    %v2315 = vpop.f32.mrb[0].mxu0
    %v2316 = vadd.f32 %v2175, %v2315
    %v2317 = vpop.f32.mrb[0].mxu0
    %v2318 = vpop.f32.mrb[0].mxu0
    %v2319 = vadd.f32 %v2175, %v2318
    %v2320 = vpop.f32.mrb[0].mxu0
    %2321 = vdwg.mxu0
    %2322 = vst [vmem:[#allocation11] sm:$0xff] %v2260
    %2323 = vst [vmem:[#allocation11 + $0x8] sm:$0xff] %v2263
    %2324 = vst [vmem:[#allocation11 + $0x10] sm:$0xff] %v2268
    %2325 = vst [vmem:[#allocation11 + $0x18] sm:$0xff] %v2271
    %2326 = vst [vmem:[#allocation11 + $0x20] sm:$0xff] %v2276
    %2327 = vst [vmem:[#allocation11 + $0x28] sm:$0xff] %v2279
    %2328 = vst [vmem:[#allocation11 + $0x30] sm:$0xff] %v2284
    %2329 = vst [vmem:[#allocation11 + $0x38] sm:$0xff] %v2287
    %2330 = vst [vmem:[#allocation11 + $0x40] sm:$0xff] %v2292
    %2331 = vst [vmem:[#allocation11 + $0x48] sm:$0xff] %v2295
    %2332 = vst [vmem:[#allocation11 + $0x50] sm:$0xff] %v2300
    %2333 = vst [vmem:[#allocation11 + $0x58] sm:$0xff] %v2303
    %2334 = vst [vmem:[#allocation11 + $0x60] sm:$0xff] %v2308
    %2335 = vst [vmem:[#allocation11 + $0x68] sm:$0xff] %v2311
    %2336 = vst [vmem:[#allocation11 + $0x70] sm:$0xff] %v2316
    %2337 = vst [vmem:[#allocation11 + $0x78] sm:$0xff] %v2319
    // Predicated region
    $region54: #{tpu_custom_call.1} parent=1 // pred_check
      _
    $region55: #{tpu_custom_call.1} parent=1 // pred_check_branch
      %2339 = sbr.rel (0) target = $region57
    $region56: #{tpu_custom_call.1} parent=1 // pred_region
      %s2341 = ssub.s32 2048, 2048
      %2342 = vsyncadd [#allocation4], %s2341
      %s2343 = sshll.u32 [#allocation11], 4
      %s2344 = int_to_ptr.vmem [resolvable:$true] %s2343
      %2349 = dma.vmem_to_hbm [thread:$0]  %s2344, 2048, %s8, [#allocation4], 128, 128, 8
    $region57: #{tpu_custom_call.1} parent=1 // pred_fallthru
      _
    // Predicated region
    $region58: #{tpu_custom_call.1} parent=1 // pred_check
      _
    $region59: #{tpu_custom_call.1} parent=1 // pred_check_branch
      %2351 = sbr.rel (0) target = $region61
    $region60: #{tpu_custom_call.1} parent=1 // pred_region
      %2352 = dma.done [#allocation4], 2048
    $region61: #{tpu_custom_call.1} parent=1 // pred_fallthru
      _
    %2353 = vsyncpa [#allocation3], 1
    %2354 = vsyncpa [#allocation6], 1
    %2355 = vsyncpa [#allocation9], 1
    %2356 = vsyncpa [#allocation4], 1

</llo_original>
